<compile_context>
chip_gen: v7x
topology: tpu7x:2x2x1
jax: 0.10.0
libtpu: 0.0.40
codegen_flags: <defaults>
</compile_context>

<pallas_src>
import math
import numpy as np

import jax
import jax.numpy as jnp
from jax.experimental import pallas as pl
from jax.experimental.pallas import tpu as pltpu

LIMIT = 1.0          # spline defined on [-LIMIT, LIMIT]
NUM_BINS = 8
MIN_W = 1e-4
MIN_H = 1e-4
MIN_D = 1e-4
SOFTPLUS_CONST = math.log(math.exp(1.0 - MIN_D) - 1.0)


def _round_up(a, b):
    return ((a + b - 1) // b) * b


def _softplus(a):
    # matches F.softplus (threshold=20)
    return jnp.where(a > 20.0, a, jnp.log(1.0 + jnp.exp(jnp.minimum(a, 20.0))))


# ------------------------------ fused kernel -------------------------------- #

def _make_fused_kernel(D, Dt, Dn, K):
    """Build the fused MLP + spline + interleave kernel (statics baked in)."""
    P = 3 * K - 1
    span = 2.0 * LIMIT
    left = -LIMIT
    w_scale = 1.0 - MIN_W * K
    h_scale = 1.0 - MIN_H * K

    def kernel(x_ref, s1_ref, s2_ref, p1_ref, p2_ref,
               w1_ref, b1_ref, w2_ref, b2_ref, w3_ref, b3_ref,
               out_ref, ld_ref):
        x = x_ref[...]                                              # [TB, D]

        # Static masked split via constant 0/1 selection matrices (MXU, exact).
        x1 = jnp.dot(x, s1_ref[...], preferred_element_type=jnp.float32)   # [TB, Dt]
        x2 = jnp.dot(x, s2_ref[...], preferred_element_type=jnp.float32)   # [TB, Dn]

        # Conditioner MLP (2 hidden ReLU layers + linear head, bin-major W3).
        h = jnp.dot(x2, w1_ref[...], preferred_element_type=jnp.float32) + b1_ref[...]
        h = jnp.maximum(h, 0.0)
        h = jnp.dot(h, w2_ref[...], preferred_element_type=jnp.float32) + b2_ref[...]
        h = jnp.maximum(h, 0.0)
        raw = jnp.dot(h, w3_ref[...], preferred_element_type=jnp.float32) + b3_ref[...]
        # raw: [TB, P*Dt], bin-major -> parameter j lives in lanes [j*Dt, (j+1)*Dt)

        def param(j):
            return raw[:, j * Dt:(j + 1) * Dt]                      # [TB, Dt]

        rw = [param(j) for j in range(K)]
        rh = [param(K + j) for j in range(K)]
        rd = [param(2 * K + j) for j in range(K - 1)]

        # Softmax over the (unrolled) bin axis: full-lane [TB, Dt] VPU ops.
        # Exact f32 divide for the normalizer (approx reciprocal broke logdet
        # parity at 5e-3).
        def softmax_bins(ts):
            m = ts[0]
            for t in ts[1:]:
                m = jnp.maximum(m, t)
            es = [jnp.exp(t - m) for t in ts]
            s = es[0]
            for e in es[1:]:
                s = s + e
            inv = 1.0 / s                                           # exact divide
            return [e * inv for e in es]

        widths = [span * (MIN_W + w_scale * t) for t in softmax_bins(rw)]
        heights = [span * (MIN_H + h_scale * t) for t in softmax_bins(rh)]
        dinner = [_softplus(t + SOFTPLUS_CONST) + MIN_D for t in rd]

        # Cumulative bin edges as a running sum over the unrolled bin axis.
        def edges(bins):
            lowers, uppers = [], []
            run = jnp.zeros_like(bins[0])
            for b in bins:
                lowers.append(left + run)
                run = run + b
                uppers.append(left + run)
            return lowers, uppers

        low_x, up_x = edges(widths)
        low_y, _ = edges(heights)

        out_mask = (x1 <= (left + 1e-3)) | (x1 >= (LIMIT - 1e-3))
        x_in = jnp.where(out_mask, 0.0, x1)

        # searchsorted(right=True) - 1  ==  count of interior upper edges <= x.
        cnt = jnp.zeros(x_in.shape, jnp.int32)
        for ux in up_x:
            cnt = cnt + (ux <= x_in).astype(jnp.int32)
        bin_idx = jnp.minimum(cnt, K - 1)

        sel = [bin_idx == j for j in range(K)]                      # reused masks

        def gather(tiles):
            acc = tiles[0]
            for j in range(1, K):
                acc = jnp.where(sel[j], tiles[j], acc)
            return acc

        xk = gather(low_x)
        yk = gather(low_y)
        wk = gather(widths)
        hk = gather(heights)

        # Boundary derivative (=1) handled by the select-chain initial value:
        ones = jnp.ones_like(x1)
        dk = ones                                                   # lower-edge deriv
        for j in range(1, K):
            dk = jnp.where(sel[j], dinner[j - 1], dk)
        dk1 = ones                                                  # upper-edge deriv
        for j in range(K - 1):
            dk1 = jnp.where(sel[j], dinner[j], dk1)

        # Rational-quadratic spline (forward) + logdet (all exact f32 math).
        sk = hk / wk
        eps = (x_in - xk) / wk
        one_m = 1.0 - eps
        et = eps * one_m
        e2 = eps * eps
        beta = sk + (dk1 + dk - 2.0 * sk) * et
        alpha = hk * (sk * e2 + dk * et)
        y = yk + alpha / beta
        y = jnp.where(out_mask, x1, y)

        ld = (2.0 * jnp.log(sk)
              + jnp.log(dk1 * e2 + 2.0 * sk * et + dk * one_m * one_m)
              - 2.0 * jnp.log(beta))
        ld = jnp.where(out_mask, 0.0, ld)

        # Lane-dense interleaved output, assembled in-kernel (exact 0/1 scatter).
        out = (jnp.dot(y, p1_ref[...], preferred_element_type=jnp.float32)
               + jnp.dot(x2, p2_ref[...], preferred_element_type=jnp.float32))
        out_ref[...] = out.astype(out_ref.dtype)
        ld_ref[...] = jnp.sum(ld, axis=-1, keepdims=True)

    return kernel


# ------------------------------ JAX wrapper -------------------------------- #

def init_params(key, in_dim, hidden, out_dim):
    ks = jax.random.split(key, 6)

    def lin(kw, kb, fan_in, fan_out):
        bound = 1.0 / math.sqrt(fan_in)
        w = jax.random.uniform(kw, (fan_in, fan_out), jnp.float32, -bound, bound)
        b = jax.random.uniform(kb, (1, fan_out), jnp.float32, -bound, bound)
        return w, b

    w1, b1 = lin(ks[0], ks[1], in_dim, hidden)
    w2, b2 = lin(ks[2], ks[3], hidden, hidden)
    w3, b3 = lin(ks[4], ks[5], hidden, out_dim)
    return dict(w1=w1, b1=b1, w2=w2, b2=b2, w3=w3, b3=b3)


def coupling_spline_forward(x, mask_np, params, *, num_bins=NUM_BINS, batch_tile=256):
    """Forward pass of CouplingSplineLayer. Returns (out [B, D], logdet [B])."""
    mask_np = np.asarray(mask_np, dtype=bool)
    idx_t = np.where(mask_np)[0]
    idx_n = np.where(~mask_np)[0]
    B, D = x.shape
    Dt = int(idx_t.size)
    Dn = int(idx_n.size)
    K = int(num_bins)
    P = 3 * K - 1
    H = params["w1"].shape[1]

    # Constant 0/1 selection (gather) / scatter matrices for the static mask.
    p1 = np.zeros((Dt, D), np.float32)
    p1[np.arange(Dt), idx_t] = 1.0
    p2 = np.zeros((Dn, D), np.float32)
    p2[np.arange(Dn), idx_n] = 1.0
    s1 = jnp.asarray(p1.T.copy())       # [D, Dt]: x1 = x @ s1
    s2 = jnp.asarray(p2.T.copy())       # [D, Dn]: x2 = x @ s2
    p1 = jnp.asarray(p1)                # [Dt, D]: out += y  @ p1
    p2 = jnp.asarray(p2)                # [Dn, D]: out += x2 @ p2

    # Permute W3/b3 columns offline: PyTorch ordering is dim-major
    # (col = t*P + j); the kernel wants bin-major (col = j*Dt + t) so each
    # per-bin parameter is a contiguous lane slice.
    jj = np.repeat(np.arange(P), Dt)
    tt = np.tile(np.arange(Dt), P)
    perm = tt * P + jj
    w3p = params["w3"][:, perm]
    b3p = params["b3"][:, perm]

    # Batch tile: sized against the smallest per-core VMEM budget (v7x:
    # 64 MiB physical / 32 MiB default scoped); keep double-buffered tiles
    # well under ~8 MiB so one code path also suits v5e/v6e.
    batch_tile = max(8, (batch_tile // 8) * 8)
    row_bytes = 4 * (D + Dn + 2 * H + P * Dt + 16 * Dt)
    tb_cap = max(8, ((8 * 1024 * 1024) // max(row_bytes, 1)) // 8 * 8)
    TB = min(batch_tile, tb_cap, _round_up(B, 8))
    B_pad = _round_up(B, TB)
    x_pad = jnp.pad(x, ((0, B_pad - B), (0, 0))) if B_pad != B else x

    kernel = _make_fused_kernel(D, Dt, Dn, K)
    const_spec = lambda shape: pl.BlockSpec(shape, lambda i: (0, 0))

    out_pad, ld_pad = pl.pallas_call(
        kernel,
        out_shape=(jax.ShapeDtypeStruct((B_pad, D), jnp.float32),
                   jax.ShapeDtypeStruct((B_pad, 1), jnp.float32)),
        grid=(B_pad // TB,),
        in_specs=[
            pl.BlockSpec((TB, D), lambda i: (i, 0)),     # x (streams per tile)
            const_spec((D, Dt)),                         # s1
            const_spec((D, Dn)),                         # s2
            const_spec((Dt, D)),                         # p1
            const_spec((Dn, D)),                         # p2
            const_spec((Dn, H)),                         # w1  (resident)
            const_spec((1, H)),                          # b1
            const_spec((H, H)),                          # w2
            const_spec((1, H)),                          # b2
            const_spec((H, P * Dt)),                     # w3 (bin-major)
            const_spec((1, P * Dt)),                     # b3 (bin-major)
        ],
        out_specs=(pl.BlockSpec((TB, D), lambda i: (i, 0)),
                   pl.BlockSpec((TB, 1), lambda i: (i, 0))),
        compiler_params=pltpu.CompilerParams(
            dimension_semantics=("parallel",),
            vmem_limit_bytes=32 * 1024 * 1024),
    )(x_pad, s1, s2, p1, p2,
      params["w1"], params["b1"], params["w2"], params["b2"], w3p, b3p)

    return out_pad[:B], ld_pad[:B, 0]


# --------------------------- pure-JAX reference ----------------------------- #

def reference_forward(x, mask_np, params):
    idx_t = np.where(mask_np)[0]
    idx_n = np.where(~mask_np)[0]
    x1 = x[:, idx_t]
    x2 = x[:, idx_n]
    h = jnp.maximum(x2 @ params["w1"] + params["b1"], 0.0)
    h = jnp.maximum(h @ params["w2"] + params["b2"], 0.0)
    raw = h @ params["w3"] + params["b3"]
    B, Dt = x1.shape
    K = NUM_BINS
    raw = raw.reshape(B, Dt, 3 * K - 1)
    rw, rh, rd = raw[..., :K], raw[..., K:2 * K], raw[..., 2 * K:]
    left = -LIMIT
    span = 2 * LIMIT
    widths = span * (MIN_W + (1 - MIN_W * K) * jax.nn.softmax(rw, -1))
    heights = span * (MIN_H + (1 - MIN_H * K) * jax.nn.softmax(rh, -1))
    dinner = jax.nn.softplus(rd + SOFTPLUS_CONST) + MIN_D
    cw = jnp.cumsum(widths, -1)
    ch = jnp.cumsum(heights, -1)
    zpad = jnp.zeros((B, Dt, 1), jnp.float32)
    edge_x = jnp.concatenate([zpad, cw], -1) + left
    edge_y = jnp.concatenate([zpad, ch], -1) + left
    ones = jnp.ones((B, Dt, 1), jnp.float32)
    derivs = jnp.concatenate([ones, dinner, ones], -1)
    out_mask = (x1 <= left + 1e-3) | (x1 >= LIMIT - 1e-3)
    x_in = jnp.where(out_mask, 0.0, x1)
    bin_idx = jnp.sum((edge_x <= x_in[..., None]).astype(jnp.int32), -1) - 1
    bin_idx = jnp.clip(bin_idx, 0, K - 1)
    take = lambda v: jnp.take_along_axis(v, bin_idx[..., None], axis=-1)[..., 0]
    xk, yk, wk, hk = take(edge_x), take(edge_y), take(widths), take(heights)
    dk, dk1 = take(derivs), take(derivs[..., 1:])
    sk = hk / wk
    eps = (x_in - xk) / wk
    et = eps * (1 - eps)
    e2 = eps * eps
    beta = sk + (dk1 + dk - 2 * sk) * et
    y = yk + hk * (sk * e2 + dk * et) / beta
    y = jnp.where(out_mask, x1, y)
    ld = 2 * jnp.log(sk) + jnp.log(dk1 * e2 + 2 * sk * et + dk * (1 - eps) ** 2) - 2 * jnp.log(beta)
    ld = jnp.where(out_mask, 0.0, ld)
    out = jnp.zeros_like(x).at[:, idx_t].set(y).at[:, idx_n].set(x2)
    return out, ld.sum(-1)


# ---------------------------------- main ------------------------------------ #

if __name__ == "__main__":
    key = jax.random.PRNGKey(0)
    B, D = 12, 8
    HIDDEN = 32
    mask_np = np.array([True, False] * (D // 2))          # transform even features
    Dt = int(mask_np.sum())
    Dn = D - Dt

    kx, kp = jax.random.split(key)
    # values outside [-0.999, 0.999] exercise the identity/out-of-range path
    x = jax.random.uniform(kx, (B, D), jnp.float32, -1.2, 1.2)
    params = init_params(kp, Dn, HIDDEN, Dt * (3 * NUM_BINS - 1))

    # batch_tile=8 forces a multi-step (padded) grid even at this tiny B.
    out, logdet = coupling_spline_forward(x, mask_np, params, batch_tile=8)
    out, logdet = jax.block_until_ready((out, logdet))

    ref_out, ref_ld = reference_forward(x, mask_np, params)
    np.testing.assert_allclose(np.asarray(out), np.asarray(ref_out), atol=5e-3, rtol=5e-3)
    np.testing.assert_allclose(np.asarray(logdet), np.asarray(ref_ld), atol=5e-3, rtol=5e-3)

    print("KERNEL_OK")
</pallas_src>

<mosaic_0001>
module attributes {stable_mosaic.version = 11 : i64} {
  func.func @kernel(%arg0: i32, %arg1: memref<8x8xf32, #tpu.memory_space<vmem>>, %arg2: memref<8x4xf32, #tpu.memory_space<vmem>>, %arg3: memref<8x4xf32, #tpu.memory_space<vmem>>, %arg4: memref<4x8xf32, #tpu.memory_space<vmem>>, %arg5: memref<4x8xf32, #tpu.memory_space<vmem>>, %arg6: memref<4x32xf32, #tpu.memory_space<vmem>>, %arg7: memref<1x32xf32, #tpu.memory_space<vmem>>, %arg8: memref<32x32xf32, #tpu.memory_space<vmem>>, %arg9: memref<1x32xf32, #tpu.memory_space<vmem>>, %arg10: memref<32x92xf32, #tpu.memory_space<vmem>>, %arg11: memref<1x92xf32, #tpu.memory_space<vmem>>, %arg12: memref<8x8xf32, #tpu.memory_space<vmem>>, %arg13: memref<8x1xf32, #tpu.memory_space<vmem>>) attributes {dimension_semantics = [#tpu.dimension_semantics<parallel>], iteration_bounds = array<i64: 2>, scalar_prefetch = 0 : i64, scratch_operands = 0 : i64, tpu.core_type = #tpu.core_type<tc>, window_params = [{transform_indices = @transform_0, window_bounds = array<i64: 8, 8>}, {pipeline_mode = #tpu.pipeline_mode<synchronous>, transform_indices = @transform_1, window_bounds = array<i64: 8, 4>}, {pipeline_mode = #tpu.pipeline_mode<synchronous>, transform_indices = @transform_2, window_bounds = array<i64: 8, 4>}, {pipeline_mode = #tpu.pipeline_mode<synchronous>, transform_indices = @transform_3, window_bounds = array<i64: 4, 8>}, {pipeline_mode = #tpu.pipeline_mode<synchronous>, transform_indices = @transform_4, window_bounds = array<i64: 4, 8>}, {pipeline_mode = #tpu.pipeline_mode<synchronous>, transform_indices = @transform_5, window_bounds = array<i64: 4, 32>}, {pipeline_mode = #tpu.pipeline_mode<synchronous>, transform_indices = @transform_6, window_bounds = array<i64: 1, 32>}, {pipeline_mode = #tpu.pipeline_mode<synchronous>, transform_indices = @transform_7, window_bounds = array<i64: 32, 32>}, {pipeline_mode = #tpu.pipeline_mode<synchronous>, transform_indices = @transform_8, window_bounds = array<i64: 1, 32>}, {pipeline_mode = #tpu.pipeline_mode<synchronous>, transform_indices = @transform_9, window_bounds = array<i64: 32, 92>}, {pipeline_mode = #tpu.pipeline_mode<synchronous>, transform_indices = @transform_10, window_bounds = array<i64: 1, 92>}, {transform_indices = @transform_11, window_bounds = array<i64: 8, 8>}, {transform_indices = @transform_12, window_bounds = array<i64: 8, 1>}]} {
    %c0 = arith.constant 0 : index
    %c0_0 = arith.constant 0 : index
    %0 = vector.load %arg1[%c0, %c0_0] : memref<8x8xf32, #tpu.memory_space<vmem>>, vector<8x8xf32>
    %c0_1 = arith.constant 0 : index
    %c0_2 = arith.constant 0 : index
    %1 = vector.load %arg2[%c0_1, %c0_2] : memref<8x4xf32, #tpu.memory_space<vmem>>, vector<8x4xf32>
    %cst = arith.constant dense<0.000000e+00> : vector<8x4xf32>
    %2 = tpu.matmul %0, %1, %cst {dimension_numbers = #tpu.dot_dimension_numbers<[1], [0], [0], [1], [0, 0, 1, 1], [], []>} : vector<8x8xf32>, vector<8x4xf32>, vector<8x4xf32> -> vector<8x4xf32>
    %c0_3 = arith.constant 0 : index
    %c0_4 = arith.constant 0 : index
    %3 = vector.load %arg3[%c0_3, %c0_4] : memref<8x4xf32, #tpu.memory_space<vmem>>, vector<8x4xf32>
    %cst_5 = arith.constant dense<0.000000e+00> : vector<8x4xf32>
    %4 = tpu.matmul %0, %3, %cst_5 {dimension_numbers = #tpu.dot_dimension_numbers<[1], [0], [0], [1], [0, 0, 1, 1], [], []>} : vector<8x8xf32>, vector<8x4xf32>, vector<8x4xf32> -> vector<8x4xf32>
    %c0_6 = arith.constant 0 : index
    %c0_7 = arith.constant 0 : index
    %5 = vector.load %arg6[%c0_6, %c0_7] : memref<4x32xf32, #tpu.memory_space<vmem>>, vector<4x32xf32>
    %cst_8 = arith.constant dense<0.000000e+00> : vector<8x32xf32>
    %6 = tpu.matmul %4, %5, %cst_8 {dimension_numbers = #tpu.dot_dimension_numbers<[1], [0], [0], [1], [0, 0, 1, 1], [], []>} : vector<8x4xf32>, vector<4x32xf32>, vector<8x32xf32> -> vector<8x32xf32>
    %c0_9 = arith.constant 0 : index
    %c0_10 = arith.constant 0 : index
    %7 = vector.load %arg7[%c0_9, %c0_10] : memref<1x32xf32, #tpu.memory_space<vmem>>, vector<1x32xf32>
    %8 = vector.broadcast %7 : vector<1x32xf32> to vector<8x32xf32>
    %9 = arith.addf %6, %8 : vector<8x32xf32>
    %cst_11 = arith.constant 0.000000e+00 : f32
    %10 = vector.broadcast %cst_11 : f32 to vector<8x32xf32>
    %11 = arith.maximumf %9, %10 : vector<8x32xf32>
    %c0_12 = arith.constant 0 : index
    %c0_13 = arith.constant 0 : index
    %12 = vector.load %arg8[%c0_12, %c0_13] : memref<32x32xf32, #tpu.memory_space<vmem>>, vector<32x32xf32>
    %cst_14 = arith.constant dense<0.000000e+00> : vector<8x32xf32>
    %13 = tpu.matmul %11, %12, %cst_14 {dimension_numbers = #tpu.dot_dimension_numbers<[1], [0], [0], [1], [0, 0, 1, 1], [], []>} : vector<8x32xf32>, vector<32x32xf32>, vector<8x32xf32> -> vector<8x32xf32>
    %c0_15 = arith.constant 0 : index
    %c0_16 = arith.constant 0 : index
    %14 = vector.load %arg9[%c0_15, %c0_16] : memref<1x32xf32, #tpu.memory_space<vmem>>, vector<1x32xf32>
    %15 = vector.broadcast %14 : vector<1x32xf32> to vector<8x32xf32>
    %16 = arith.addf %13, %15 : vector<8x32xf32>
    %cst_17 = arith.constant 0.000000e+00 : f32
    %17 = vector.broadcast %cst_17 : f32 to vector<8x32xf32>
    %18 = arith.maximumf %16, %17 : vector<8x32xf32>
    %c0_18 = arith.constant 0 : index
    %c0_19 = arith.constant 0 : index
    %19 = vector.load %arg10[%c0_18, %c0_19] : memref<32x92xf32, #tpu.memory_space<vmem>>, vector<32x92xf32>
    %cst_20 = arith.constant dense<0.000000e+00> : vector<8x92xf32>
    %20 = tpu.matmul %18, %19, %cst_20 {dimension_numbers = #tpu.dot_dimension_numbers<[1], [0], [0], [1], [0, 0, 1, 1], [], []>} : vector<8x32xf32>, vector<32x92xf32>, vector<8x92xf32> -> vector<8x92xf32>
    %c0_21 = arith.constant 0 : index
    %c0_22 = arith.constant 0 : index
    %21 = vector.load %arg11[%c0_21, %c0_22] : memref<1x92xf32, #tpu.memory_space<vmem>>, vector<1x92xf32>
    %22 = vector.broadcast %21 : vector<1x92xf32> to vector<8x92xf32>
    %23 = arith.addf %20, %22 : vector<8x92xf32>
    %24 = vector.extract_strided_slice %23 {offsets = [0, 0], sizes = [8, 4], strides = [1, 1]} : vector<8x92xf32> to vector<8x4xf32>
    %25 = vector.extract_strided_slice %23 {offsets = [0, 4], sizes = [8, 4], strides = [1, 1]} : vector<8x92xf32> to vector<8x4xf32>
    %26 = vector.extract_strided_slice %23 {offsets = [0, 8], sizes = [8, 4], strides = [1, 1]} : vector<8x92xf32> to vector<8x4xf32>
    %27 = vector.extract_strided_slice %23 {offsets = [0, 12], sizes = [8, 4], strides = [1, 1]} : vector<8x92xf32> to vector<8x4xf32>
    %28 = vector.extract_strided_slice %23 {offsets = [0, 16], sizes = [8, 4], strides = [1, 1]} : vector<8x92xf32> to vector<8x4xf32>
    %29 = vector.extract_strided_slice %23 {offsets = [0, 20], sizes = [8, 4], strides = [1, 1]} : vector<8x92xf32> to vector<8x4xf32>
    %30 = vector.extract_strided_slice %23 {offsets = [0, 24], sizes = [8, 4], strides = [1, 1]} : vector<8x92xf32> to vector<8x4xf32>
    %31 = vector.extract_strided_slice %23 {offsets = [0, 28], sizes = [8, 4], strides = [1, 1]} : vector<8x92xf32> to vector<8x4xf32>
    %32 = vector.extract_strided_slice %23 {offsets = [0, 32], sizes = [8, 4], strides = [1, 1]} : vector<8x92xf32> to vector<8x4xf32>
    %33 = vector.extract_strided_slice %23 {offsets = [0, 36], sizes = [8, 4], strides = [1, 1]} : vector<8x92xf32> to vector<8x4xf32>
    %34 = vector.extract_strided_slice %23 {offsets = [0, 40], sizes = [8, 4], strides = [1, 1]} : vector<8x92xf32> to vector<8x4xf32>
    %35 = vector.extract_strided_slice %23 {offsets = [0, 44], sizes = [8, 4], strides = [1, 1]} : vector<8x92xf32> to vector<8x4xf32>
    %36 = vector.extract_strided_slice %23 {offsets = [0, 48], sizes = [8, 4], strides = [1, 1]} : vector<8x92xf32> to vector<8x4xf32>
    %37 = vector.extract_strided_slice %23 {offsets = [0, 52], sizes = [8, 4], strides = [1, 1]} : vector<8x92xf32> to vector<8x4xf32>
    %38 = vector.extract_strided_slice %23 {offsets = [0, 56], sizes = [8, 4], strides = [1, 1]} : vector<8x92xf32> to vector<8x4xf32>
    %39 = vector.extract_strided_slice %23 {offsets = [0, 60], sizes = [8, 4], strides = [1, 1]} : vector<8x92xf32> to vector<8x4xf32>
    %40 = vector.extract_strided_slice %23 {offsets = [0, 64], sizes = [8, 4], strides = [1, 1]} : vector<8x92xf32> to vector<8x4xf32>
    %41 = vector.extract_strided_slice %23 {offsets = [0, 68], sizes = [8, 4], strides = [1, 1]} : vector<8x92xf32> to vector<8x4xf32>
    %42 = vector.extract_strided_slice %23 {offsets = [0, 72], sizes = [8, 4], strides = [1, 1]} : vector<8x92xf32> to vector<8x4xf32>
    %43 = vector.extract_strided_slice %23 {offsets = [0, 76], sizes = [8, 4], strides = [1, 1]} : vector<8x92xf32> to vector<8x4xf32>
    %44 = vector.extract_strided_slice %23 {offsets = [0, 80], sizes = [8, 4], strides = [1, 1]} : vector<8x92xf32> to vector<8x4xf32>
    %45 = vector.extract_strided_slice %23 {offsets = [0, 84], sizes = [8, 4], strides = [1, 1]} : vector<8x92xf32> to vector<8x4xf32>
    %46 = vector.extract_strided_slice %23 {offsets = [0, 88], sizes = [8, 4], strides = [1, 1]} : vector<8x92xf32> to vector<8x4xf32>
    %47 = arith.maximumf %24, %25 : vector<8x4xf32>
    %48 = arith.maximumf %47, %26 : vector<8x4xf32>
    %49 = arith.maximumf %48, %27 : vector<8x4xf32>
    %50 = arith.maximumf %49, %28 : vector<8x4xf32>
    %51 = arith.maximumf %50, %29 : vector<8x4xf32>
    %52 = arith.maximumf %51, %30 : vector<8x4xf32>
    %53 = arith.maximumf %52, %31 : vector<8x4xf32>
    %54 = arith.subf %24, %53 : vector<8x4xf32>
    %55 = math.exp %54 : vector<8x4xf32>
    %56 = arith.subf %25, %53 : vector<8x4xf32>
    %57 = math.exp %56 : vector<8x4xf32>
    %58 = arith.subf %26, %53 : vector<8x4xf32>
    %59 = math.exp %58 : vector<8x4xf32>
    %60 = arith.subf %27, %53 : vector<8x4xf32>
    %61 = math.exp %60 : vector<8x4xf32>
    %62 = arith.subf %28, %53 : vector<8x4xf32>
    %63 = math.exp %62 : vector<8x4xf32>
    %64 = arith.subf %29, %53 : vector<8x4xf32>
    %65 = math.exp %64 : vector<8x4xf32>
    %66 = arith.subf %30, %53 : vector<8x4xf32>
    %67 = math.exp %66 : vector<8x4xf32>
    %68 = arith.subf %31, %53 : vector<8x4xf32>
    %69 = math.exp %68 : vector<8x4xf32>
    %70 = arith.addf %55, %57 : vector<8x4xf32>
    %71 = arith.addf %70, %59 : vector<8x4xf32>
    %72 = arith.addf %71, %61 : vector<8x4xf32>
    %73 = arith.addf %72, %63 : vector<8x4xf32>
    %74 = arith.addf %73, %65 : vector<8x4xf32>
    %75 = arith.addf %74, %67 : vector<8x4xf32>
    %76 = arith.addf %75, %69 : vector<8x4xf32>
    %cst_23 = arith.constant 1.000000e+00 : f32
    %77 = vector.broadcast %cst_23 : f32 to vector<8x4xf32>
    %78 = arith.divf %77, %76 : vector<8x4xf32>
    %79 = arith.mulf %55, %78 : vector<8x4xf32>
    %80 = arith.mulf %57, %78 : vector<8x4xf32>
    %81 = arith.mulf %59, %78 : vector<8x4xf32>
    %82 = arith.mulf %61, %78 : vector<8x4xf32>
    %83 = arith.mulf %63, %78 : vector<8x4xf32>
    %84 = arith.mulf %65, %78 : vector<8x4xf32>
    %85 = arith.mulf %67, %78 : vector<8x4xf32>
    %86 = arith.mulf %69, %78 : vector<8x4xf32>
    %cst_24 = arith.constant 0.999199986 : f32
    %87 = vector.broadcast %cst_24 : f32 to vector<8x4xf32>
    %88 = arith.mulf %87, %79 : vector<8x4xf32>
    %cst_25 = arith.constant 9.99999974E-5 : f32
    %89 = vector.broadcast %cst_25 : f32 to vector<8x4xf32>
    %90 = arith.addf %89, %88 : vector<8x4xf32>
    %cst_26 = arith.constant 2.000000e+00 : f32
    %91 = vector.broadcast %cst_26 : f32 to vector<8x4xf32>
    %92 = arith.mulf %91, %90 : vector<8x4xf32>
    %cst_27 = arith.constant 0.999199986 : f32
    %93 = vector.broadcast %cst_27 : f32 to vector<8x4xf32>
    %94 = arith.mulf %93, %80 : vector<8x4xf32>
    %cst_28 = arith.constant 9.99999974E-5 : f32
    %95 = vector.broadcast %cst_28 : f32 to vector<8x4xf32>
    %96 = arith.addf %95, %94 : vector<8x4xf32>
    %cst_29 = arith.constant 2.000000e+00 : f32
    %97 = vector.broadcast %cst_29 : f32 to vector<8x4xf32>
    %98 = arith.mulf %97, %96 : vector<8x4xf32>
    %cst_30 = arith.constant 0.999199986 : f32
    %99 = vector.broadcast %cst_30 : f32 to vector<8x4xf32>
    %100 = arith.mulf %99, %81 : vector<8x4xf32>
    %cst_31 = arith.constant 9.99999974E-5 : f32
    %101 = vector.broadcast %cst_31 : f32 to vector<8x4xf32>
    %102 = arith.addf %101, %100 : vector<8x4xf32>
    %cst_32 = arith.constant 2.000000e+00 : f32
    %103 = vector.broadcast %cst_32 : f32 to vector<8x4xf32>
    %104 = arith.mulf %103, %102 : vector<8x4xf32>
    %cst_33 = arith.constant 0.999199986 : f32
    %105 = vector.broadcast %cst_33 : f32 to vector<8x4xf32>
    %106 = arith.mulf %105, %82 : vector<8x4xf32>
    %cst_34 = arith.constant 9.99999974E-5 : f32
    %107 = vector.broadcast %cst_34 : f32 to vector<8x4xf32>
    %108 = arith.addf %107, %106 : vector<8x4xf32>
    %cst_35 = arith.constant 2.000000e+00 : f32
    %109 = vector.broadcast %cst_35 : f32 to vector<8x4xf32>
    %110 = arith.mulf %109, %108 : vector<8x4xf32>
    %cst_36 = arith.constant 0.999199986 : f32
    %111 = vector.broadcast %cst_36 : f32 to vector<8x4xf32>
    %112 = arith.mulf %111, %83 : vector<8x4xf32>
    %cst_37 = arith.constant 9.99999974E-5 : f32
    %113 = vector.broadcast %cst_37 : f32 to vector<8x4xf32>
    %114 = arith.addf %113, %112 : vector<8x4xf32>
    %cst_38 = arith.constant 2.000000e+00 : f32
    %115 = vector.broadcast %cst_38 : f32 to vector<8x4xf32>
    %116 = arith.mulf %115, %114 : vector<8x4xf32>
    %cst_39 = arith.constant 0.999199986 : f32
    %117 = vector.broadcast %cst_39 : f32 to vector<8x4xf32>
    %118 = arith.mulf %117, %84 : vector<8x4xf32>
    %cst_40 = arith.constant 9.99999974E-5 : f32
    %119 = vector.broadcast %cst_40 : f32 to vector<8x4xf32>
    %120 = arith.addf %119, %118 : vector<8x4xf32>
    %cst_41 = arith.constant 2.000000e+00 : f32
    %121 = vector.broadcast %cst_41 : f32 to vector<8x4xf32>
    %122 = arith.mulf %121, %120 : vector<8x4xf32>
    %cst_42 = arith.constant 0.999199986 : f32
    %123 = vector.broadcast %cst_42 : f32 to vector<8x4xf32>
    %124 = arith.mulf %123, %85 : vector<8x4xf32>
    %cst_43 = arith.constant 9.99999974E-5 : f32
    %125 = vector.broadcast %cst_43 : f32 to vector<8x4xf32>
    %126 = arith.addf %125, %124 : vector<8x4xf32>
    %cst_44 = arith.constant 2.000000e+00 : f32
    %127 = vector.broadcast %cst_44 : f32 to vector<8x4xf32>
    %128 = arith.mulf %127, %126 : vector<8x4xf32>
    %cst_45 = arith.constant 0.999199986 : f32
    %129 = vector.broadcast %cst_45 : f32 to vector<8x4xf32>
    %130 = arith.mulf %129, %86 : vector<8x4xf32>
    %cst_46 = arith.constant 9.99999974E-5 : f32
    %131 = vector.broadcast %cst_46 : f32 to vector<8x4xf32>
    %132 = arith.addf %131, %130 : vector<8x4xf32>
    %cst_47 = arith.constant 2.000000e+00 : f32
    %133 = vector.broadcast %cst_47 : f32 to vector<8x4xf32>
    %134 = arith.mulf %133, %132 : vector<8x4xf32>
    %135 = arith.maximumf %32, %33 : vector<8x4xf32>
    %136 = arith.maximumf %135, %34 : vector<8x4xf32>
    %137 = arith.maximumf %136, %35 : vector<8x4xf32>
    %138 = arith.maximumf %137, %36 : vector<8x4xf32>
    %139 = arith.maximumf %138, %37 : vector<8x4xf32>
    %140 = arith.maximumf %139, %38 : vector<8x4xf32>
    %141 = arith.maximumf %140, %39 : vector<8x4xf32>
    %142 = arith.subf %32, %141 : vector<8x4xf32>
    %143 = math.exp %142 : vector<8x4xf32>
    %144 = arith.subf %33, %141 : vector<8x4xf32>
    %145 = math.exp %144 : vector<8x4xf32>
    %146 = arith.subf %34, %141 : vector<8x4xf32>
    %147 = math.exp %146 : vector<8x4xf32>
    %148 = arith.subf %35, %141 : vector<8x4xf32>
    %149 = math.exp %148 : vector<8x4xf32>
    %150 = arith.subf %36, %141 : vector<8x4xf32>
    %151 = math.exp %150 : vector<8x4xf32>
    %152 = arith.subf %37, %141 : vector<8x4xf32>
    %153 = math.exp %152 : vector<8x4xf32>
    %154 = arith.subf %38, %141 : vector<8x4xf32>
    %155 = math.exp %154 : vector<8x4xf32>
    %156 = arith.subf %39, %141 : vector<8x4xf32>
    %157 = math.exp %156 : vector<8x4xf32>
    %158 = arith.addf %143, %145 : vector<8x4xf32>
    %159 = arith.addf %158, %147 : vector<8x4xf32>
    %160 = arith.addf %159, %149 : vector<8x4xf32>
    %161 = arith.addf %160, %151 : vector<8x4xf32>
    %162 = arith.addf %161, %153 : vector<8x4xf32>
    %163 = arith.addf %162, %155 : vector<8x4xf32>
    %164 = arith.addf %163, %157 : vector<8x4xf32>
    %cst_48 = arith.constant 1.000000e+00 : f32
    %165 = vector.broadcast %cst_48 : f32 to vector<8x4xf32>
    %166 = arith.divf %165, %164 : vector<8x4xf32>
    %167 = arith.mulf %143, %166 : vector<8x4xf32>
    %168 = arith.mulf %145, %166 : vector<8x4xf32>
    %169 = arith.mulf %147, %166 : vector<8x4xf32>
    %170 = arith.mulf %149, %166 : vector<8x4xf32>
    %171 = arith.mulf %151, %166 : vector<8x4xf32>
    %172 = arith.mulf %153, %166 : vector<8x4xf32>
    %173 = arith.mulf %155, %166 : vector<8x4xf32>
    %174 = arith.mulf %157, %166 : vector<8x4xf32>
    %cst_49 = arith.constant 0.999199986 : f32
    %175 = vector.broadcast %cst_49 : f32 to vector<8x4xf32>
    %176 = arith.mulf %175, %167 : vector<8x4xf32>
    %cst_50 = arith.constant 9.99999974E-5 : f32
    %177 = vector.broadcast %cst_50 : f32 to vector<8x4xf32>
    %178 = arith.addf %177, %176 : vector<8x4xf32>
    %cst_51 = arith.constant 2.000000e+00 : f32
    %179 = vector.broadcast %cst_51 : f32 to vector<8x4xf32>
    %180 = arith.mulf %179, %178 : vector<8x4xf32>
    %cst_52 = arith.constant 0.999199986 : f32
    %181 = vector.broadcast %cst_52 : f32 to vector<8x4xf32>
    %182 = arith.mulf %181, %168 : vector<8x4xf32>
    %cst_53 = arith.constant 9.99999974E-5 : f32
    %183 = vector.broadcast %cst_53 : f32 to vector<8x4xf32>
    %184 = arith.addf %183, %182 : vector<8x4xf32>
    %cst_54 = arith.constant 2.000000e+00 : f32
    %185 = vector.broadcast %cst_54 : f32 to vector<8x4xf32>
    %186 = arith.mulf %185, %184 : vector<8x4xf32>
    %cst_55 = arith.constant 0.999199986 : f32
    %187 = vector.broadcast %cst_55 : f32 to vector<8x4xf32>
    %188 = arith.mulf %187, %169 : vector<8x4xf32>
    %cst_56 = arith.constant 9.99999974E-5 : f32
    %189 = vector.broadcast %cst_56 : f32 to vector<8x4xf32>
    %190 = arith.addf %189, %188 : vector<8x4xf32>
    %cst_57 = arith.constant 2.000000e+00 : f32
    %191 = vector.broadcast %cst_57 : f32 to vector<8x4xf32>
    %192 = arith.mulf %191, %190 : vector<8x4xf32>
    %cst_58 = arith.constant 0.999199986 : f32
    %193 = vector.broadcast %cst_58 : f32 to vector<8x4xf32>
    %194 = arith.mulf %193, %170 : vector<8x4xf32>
    %cst_59 = arith.constant 9.99999974E-5 : f32
    %195 = vector.broadcast %cst_59 : f32 to vector<8x4xf32>
    %196 = arith.addf %195, %194 : vector<8x4xf32>
    %cst_60 = arith.constant 2.000000e+00 : f32
    %197 = vector.broadcast %cst_60 : f32 to vector<8x4xf32>
    %198 = arith.mulf %197, %196 : vector<8x4xf32>
    %cst_61 = arith.constant 0.999199986 : f32
    %199 = vector.broadcast %cst_61 : f32 to vector<8x4xf32>
    %200 = arith.mulf %199, %171 : vector<8x4xf32>
    %cst_62 = arith.constant 9.99999974E-5 : f32
    %201 = vector.broadcast %cst_62 : f32 to vector<8x4xf32>
    %202 = arith.addf %201, %200 : vector<8x4xf32>
    %cst_63 = arith.constant 2.000000e+00 : f32
    %203 = vector.broadcast %cst_63 : f32 to vector<8x4xf32>
    %204 = arith.mulf %203, %202 : vector<8x4xf32>
    %cst_64 = arith.constant 0.999199986 : f32
    %205 = vector.broadcast %cst_64 : f32 to vector<8x4xf32>
    %206 = arith.mulf %205, %172 : vector<8x4xf32>
    %cst_65 = arith.constant 9.99999974E-5 : f32
    %207 = vector.broadcast %cst_65 : f32 to vector<8x4xf32>
    %208 = arith.addf %207, %206 : vector<8x4xf32>
    %cst_66 = arith.constant 2.000000e+00 : f32
    %209 = vector.broadcast %cst_66 : f32 to vector<8x4xf32>
    %210 = arith.mulf %209, %208 : vector<8x4xf32>
    %cst_67 = arith.constant 0.999199986 : f32
    %211 = vector.broadcast %cst_67 : f32 to vector<8x4xf32>
    %212 = arith.mulf %211, %173 : vector<8x4xf32>
    %cst_68 = arith.constant 9.99999974E-5 : f32
    %213 = vector.broadcast %cst_68 : f32 to vector<8x4xf32>
    %214 = arith.addf %213, %212 : vector<8x4xf32>
    %cst_69 = arith.constant 2.000000e+00 : f32
    %215 = vector.broadcast %cst_69 : f32 to vector<8x4xf32>
    %216 = arith.mulf %215, %214 : vector<8x4xf32>
    %cst_70 = arith.constant 0.999199986 : f32
    %217 = vector.broadcast %cst_70 : f32 to vector<8x4xf32>
    %218 = arith.mulf %217, %174 : vector<8x4xf32>
    %cst_71 = arith.constant 9.99999974E-5 : f32
    %219 = vector.broadcast %cst_71 : f32 to vector<8x4xf32>
    %220 = arith.addf %219, %218 : vector<8x4xf32>
    %cst_72 = arith.constant 2.000000e+00 : f32
    %221 = vector.broadcast %cst_72 : f32 to vector<8x4xf32>
    %222 = arith.mulf %221, %220 : vector<8x4xf32>
    %cst_73 = arith.constant 0.541166663 : f32
    %223 = vector.broadcast %cst_73 : f32 to vector<8x4xf32>
    %224 = arith.addf %40, %223 : vector<8x4xf32>
    %cst_74 = arith.constant 2.000000e+01 : f32
    %225 = vector.broadcast %cst_74 : f32 to vector<8x4xf32>
    %226 = arith.cmpf ogt, %224, %225 : vector<8x4xf32>
    %cst_75 = arith.constant 2.000000e+01 : f32
    %227 = vector.broadcast %cst_75 : f32 to vector<8x4xf32>
    %228 = arith.minimumf %224, %227 : vector<8x4xf32>
    %229 = math.exp %228 : vector<8x4xf32>
    %cst_76 = arith.constant 1.000000e+00 : f32
    %230 = vector.broadcast %cst_76 : f32 to vector<8x4xf32>
    %231 = arith.addf %230, %229 : vector<8x4xf32>
    %232 = math.log %231 : vector<8x4xf32>
    %233 = arith.select %226, %224, %232 : vector<8x4xi1>, vector<8x4xf32>
    %cst_77 = arith.constant 9.99999974E-5 : f32
    %234 = vector.broadcast %cst_77 : f32 to vector<8x4xf32>
    %235 = arith.addf %233, %234 : vector<8x4xf32>
    %cst_78 = arith.constant 0.541166663 : f32
    %236 = vector.broadcast %cst_78 : f32 to vector<8x4xf32>
    %237 = arith.addf %41, %236 : vector<8x4xf32>
    %cst_79 = arith.constant 2.000000e+01 : f32
    %238 = vector.broadcast %cst_79 : f32 to vector<8x4xf32>
    %239 = arith.cmpf ogt, %237, %238 : vector<8x4xf32>
    %cst_80 = arith.constant 2.000000e+01 : f32
    %240 = vector.broadcast %cst_80 : f32 to vector<8x4xf32>
    %241 = arith.minimumf %237, %240 : vector<8x4xf32>
    %242 = math.exp %241 : vector<8x4xf32>
    %cst_81 = arith.constant 1.000000e+00 : f32
    %243 = vector.broadcast %cst_81 : f32 to vector<8x4xf32>
    %244 = arith.addf %243, %242 : vector<8x4xf32>
    %245 = math.log %244 : vector<8x4xf32>
    %246 = arith.select %239, %237, %245 : vector<8x4xi1>, vector<8x4xf32>
    %cst_82 = arith.constant 9.99999974E-5 : f32
    %247 = vector.broadcast %cst_82 : f32 to vector<8x4xf32>
    %248 = arith.addf %246, %247 : vector<8x4xf32>
    %cst_83 = arith.constant 0.541166663 : f32
    %249 = vector.broadcast %cst_83 : f32 to vector<8x4xf32>
    %250 = arith.addf %42, %249 : vector<8x4xf32>
    %cst_84 = arith.constant 2.000000e+01 : f32
    %251 = vector.broadcast %cst_84 : f32 to vector<8x4xf32>
    %252 = arith.cmpf ogt, %250, %251 : vector<8x4xf32>
    %cst_85 = arith.constant 2.000000e+01 : f32
    %253 = vector.broadcast %cst_85 : f32 to vector<8x4xf32>
    %254 = arith.minimumf %250, %253 : vector<8x4xf32>
    %255 = math.exp %254 : vector<8x4xf32>
    %cst_86 = arith.constant 1.000000e+00 : f32
    %256 = vector.broadcast %cst_86 : f32 to vector<8x4xf32>
    %257 = arith.addf %256, %255 : vector<8x4xf32>
    %258 = math.log %257 : vector<8x4xf32>
    %259 = arith.select %252, %250, %258 : vector<8x4xi1>, vector<8x4xf32>
    %cst_87 = arith.constant 9.99999974E-5 : f32
    %260 = vector.broadcast %cst_87 : f32 to vector<8x4xf32>
    %261 = arith.addf %259, %260 : vector<8x4xf32>
    %cst_88 = arith.constant 0.541166663 : f32
    %262 = vector.broadcast %cst_88 : f32 to vector<8x4xf32>
    %263 = arith.addf %43, %262 : vector<8x4xf32>
    %cst_89 = arith.constant 2.000000e+01 : f32
    %264 = vector.broadcast %cst_89 : f32 to vector<8x4xf32>
    %265 = arith.cmpf ogt, %263, %264 : vector<8x4xf32>
    %cst_90 = arith.constant 2.000000e+01 : f32
    %266 = vector.broadcast %cst_90 : f32 to vector<8x4xf32>
    %267 = arith.minimumf %263, %266 : vector<8x4xf32>
    %268 = math.exp %267 : vector<8x4xf32>
    %cst_91 = arith.constant 1.000000e+00 : f32
    %269 = vector.broadcast %cst_91 : f32 to vector<8x4xf32>
    %270 = arith.addf %269, %268 : vector<8x4xf32>
    %271 = math.log %270 : vector<8x4xf32>
    %272 = arith.select %265, %263, %271 : vector<8x4xi1>, vector<8x4xf32>
    %cst_92 = arith.constant 9.99999974E-5 : f32
    %273 = vector.broadcast %cst_92 : f32 to vector<8x4xf32>
    %274 = arith.addf %272, %273 : vector<8x4xf32>
    %cst_93 = arith.constant 0.541166663 : f32
    %275 = vector.broadcast %cst_93 : f32 to vector<8x4xf32>
    %276 = arith.addf %44, %275 : vector<8x4xf32>
    %cst_94 = arith.constant 2.000000e+01 : f32
    %277 = vector.broadcast %cst_94 : f32 to vector<8x4xf32>
    %278 = arith.cmpf ogt, %276, %277 : vector<8x4xf32>
    %cst_95 = arith.constant 2.000000e+01 : f32
    %279 = vector.broadcast %cst_95 : f32 to vector<8x4xf32>
    %280 = arith.minimumf %276, %279 : vector<8x4xf32>
    %281 = math.exp %280 : vector<8x4xf32>
    %cst_96 = arith.constant 1.000000e+00 : f32
    %282 = vector.broadcast %cst_96 : f32 to vector<8x4xf32>
    %283 = arith.addf %282, %281 : vector<8x4xf32>
    %284 = math.log %283 : vector<8x4xf32>
    %285 = arith.select %278, %276, %284 : vector<8x4xi1>, vector<8x4xf32>
    %cst_97 = arith.constant 9.99999974E-5 : f32
    %286 = vector.broadcast %cst_97 : f32 to vector<8x4xf32>
    %287 = arith.addf %285, %286 : vector<8x4xf32>
    %cst_98 = arith.constant 0.541166663 : f32
    %288 = vector.broadcast %cst_98 : f32 to vector<8x4xf32>
    %289 = arith.addf %45, %288 : vector<8x4xf32>
    %cst_99 = arith.constant 2.000000e+01 : f32
    %290 = vector.broadcast %cst_99 : f32 to vector<8x4xf32>
    %291 = arith.cmpf ogt, %289, %290 : vector<8x4xf32>
    %cst_100 = arith.constant 2.000000e+01 : f32
    %292 = vector.broadcast %cst_100 : f32 to vector<8x4xf32>
    %293 = arith.minimumf %289, %292 : vector<8x4xf32>
    %294 = math.exp %293 : vector<8x4xf32>
    %cst_101 = arith.constant 1.000000e+00 : f32
    %295 = vector.broadcast %cst_101 : f32 to vector<8x4xf32>
    %296 = arith.addf %295, %294 : vector<8x4xf32>
    %297 = math.log %296 : vector<8x4xf32>
    %298 = arith.select %291, %289, %297 : vector<8x4xi1>, vector<8x4xf32>
    %cst_102 = arith.constant 9.99999974E-5 : f32
    %299 = vector.broadcast %cst_102 : f32 to vector<8x4xf32>
    %300 = arith.addf %298, %299 : vector<8x4xf32>
    %cst_103 = arith.constant 0.541166663 : f32
    %301 = vector.broadcast %cst_103 : f32 to vector<8x4xf32>
    %302 = arith.addf %46, %301 : vector<8x4xf32>
    %cst_104 = arith.constant 2.000000e+01 : f32
    %303 = vector.broadcast %cst_104 : f32 to vector<8x4xf32>
    %304 = arith.cmpf ogt, %302, %303 : vector<8x4xf32>
    %cst_105 = arith.constant 2.000000e+01 : f32
    %305 = vector.broadcast %cst_105 : f32 to vector<8x4xf32>
    %306 = arith.minimumf %302, %305 : vector<8x4xf32>
    %307 = math.exp %306 : vector<8x4xf32>
    %cst_106 = arith.constant 1.000000e+00 : f32
    %308 = vector.broadcast %cst_106 : f32 to vector<8x4xf32>
    %309 = arith.addf %308, %307 : vector<8x4xf32>
    %310 = math.log %309 : vector<8x4xf32>
    %311 = arith.select %304, %302, %310 : vector<8x4xi1>, vector<8x4xf32>
    %cst_107 = arith.constant 9.99999974E-5 : f32
    %312 = vector.broadcast %cst_107 : f32 to vector<8x4xf32>
    %313 = arith.addf %311, %312 : vector<8x4xf32>
    %cst_108 = arith.constant 0.000000e+00 : f32
    %314 = vector.broadcast %cst_108 : f32 to vector<8x4xf32>
    %cst_109 = arith.constant -1.000000e+00 : f32
    %315 = vector.broadcast %cst_109 : f32 to vector<8x4xf32>
    %316 = arith.addf %315, %314 : vector<8x4xf32>
    %317 = arith.addf %314, %92 : vector<8x4xf32>
    %cst_110 = arith.constant -1.000000e+00 : f32
    %318 = vector.broadcast %cst_110 : f32 to vector<8x4xf32>
    %319 = arith.addf %318, %317 : vector<8x4xf32>
    %cst_111 = arith.constant -1.000000e+00 : f32
    %320 = vector.broadcast %cst_111 : f32 to vector<8x4xf32>
    %321 = arith.addf %320, %317 : vector<8x4xf32>
    %322 = arith.addf %317, %98 : vector<8x4xf32>
    %cst_112 = arith.constant -1.000000e+00 : f32
    %323 = vector.broadcast %cst_112 : f32 to vector<8x4xf32>
    %324 = arith.addf %323, %322 : vector<8x4xf32>
    %cst_113 = arith.constant -1.000000e+00 : f32
    %325 = vector.broadcast %cst_113 : f32 to vector<8x4xf32>
    %326 = arith.addf %325, %322 : vector<8x4xf32>
    %327 = arith.addf %322, %104 : vector<8x4xf32>
    %cst_114 = arith.constant -1.000000e+00 : f32
    %328 = vector.broadcast %cst_114 : f32 to vector<8x4xf32>
    %329 = arith.addf %328, %327 : vector<8x4xf32>
    %cst_115 = arith.constant -1.000000e+00 : f32
    %330 = vector.broadcast %cst_115 : f32 to vector<8x4xf32>
    %331 = arith.addf %330, %327 : vector<8x4xf32>
    %332 = arith.addf %327, %110 : vector<8x4xf32>
    %cst_116 = arith.constant -1.000000e+00 : f32
    %333 = vector.broadcast %cst_116 : f32 to vector<8x4xf32>
    %334 = arith.addf %333, %332 : vector<8x4xf32>
    %cst_117 = arith.constant -1.000000e+00 : f32
    %335 = vector.broadcast %cst_117 : f32 to vector<8x4xf32>
    %336 = arith.addf %335, %332 : vector<8x4xf32>
    %337 = arith.addf %332, %116 : vector<8x4xf32>
    %cst_118 = arith.constant -1.000000e+00 : f32
    %338 = vector.broadcast %cst_118 : f32 to vector<8x4xf32>
    %339 = arith.addf %338, %337 : vector<8x4xf32>
    %cst_119 = arith.constant -1.000000e+00 : f32
    %340 = vector.broadcast %cst_119 : f32 to vector<8x4xf32>
    %341 = arith.addf %340, %337 : vector<8x4xf32>
    %342 = arith.addf %337, %122 : vector<8x4xf32>
    %cst_120 = arith.constant -1.000000e+00 : f32
    %343 = vector.broadcast %cst_120 : f32 to vector<8x4xf32>
    %344 = arith.addf %343, %342 : vector<8x4xf32>
    %cst_121 = arith.constant -1.000000e+00 : f32
    %345 = vector.broadcast %cst_121 : f32 to vector<8x4xf32>
    %346 = arith.addf %345, %342 : vector<8x4xf32>
    %347 = arith.addf %342, %128 : vector<8x4xf32>
    %cst_122 = arith.constant -1.000000e+00 : f32
    %348 = vector.broadcast %cst_122 : f32 to vector<8x4xf32>
    %349 = arith.addf %348, %347 : vector<8x4xf32>
    %cst_123 = arith.constant -1.000000e+00 : f32
    %350 = vector.broadcast %cst_123 : f32 to vector<8x4xf32>
    %351 = arith.addf %350, %347 : vector<8x4xf32>
    %352 = arith.addf %347, %134 : vector<8x4xf32>
    %cst_124 = arith.constant -1.000000e+00 : f32
    %353 = vector.broadcast %cst_124 : f32 to vector<8x4xf32>
    %354 = arith.addf %353, %352 : vector<8x4xf32>
    %cst_125 = arith.constant 0.000000e+00 : f32
    %355 = vector.broadcast %cst_125 : f32 to vector<8x4xf32>
    %cst_126 = arith.constant -1.000000e+00 : f32
    %356 = vector.broadcast %cst_126 : f32 to vector<8x4xf32>
    %357 = arith.addf %356, %355 : vector<8x4xf32>
    %358 = arith.addf %355, %180 : vector<8x4xf32>
    %cst_127 = arith.constant -1.000000e+00 : f32
    %359 = vector.broadcast %cst_127 : f32 to vector<8x4xf32>
    %360 = arith.addf %359, %358 : vector<8x4xf32>
    %361 = arith.addf %358, %186 : vector<8x4xf32>
    %cst_128 = arith.constant -1.000000e+00 : f32
    %362 = vector.broadcast %cst_128 : f32 to vector<8x4xf32>
    %363 = arith.addf %362, %361 : vector<8x4xf32>
    %364 = arith.addf %361, %192 : vector<8x4xf32>
    %cst_129 = arith.constant -1.000000e+00 : f32
    %365 = vector.broadcast %cst_129 : f32 to vector<8x4xf32>
    %366 = arith.addf %365, %364 : vector<8x4xf32>
    %367 = arith.addf %364, %198 : vector<8x4xf32>
    %cst_130 = arith.constant -1.000000e+00 : f32
    %368 = vector.broadcast %cst_130 : f32 to vector<8x4xf32>
    %369 = arith.addf %368, %367 : vector<8x4xf32>
    %370 = arith.addf %367, %204 : vector<8x4xf32>
    %cst_131 = arith.constant -1.000000e+00 : f32
    %371 = vector.broadcast %cst_131 : f32 to vector<8x4xf32>
    %372 = arith.addf %371, %370 : vector<8x4xf32>
    %373 = arith.addf %370, %210 : vector<8x4xf32>
    %cst_132 = arith.constant -1.000000e+00 : f32
    %374 = vector.broadcast %cst_132 : f32 to vector<8x4xf32>
    %375 = arith.addf %374, %373 : vector<8x4xf32>
    %376 = arith.addf %373, %216 : vector<8x4xf32>
    %cst_133 = arith.constant -1.000000e+00 : f32
    %377 = vector.broadcast %cst_133 : f32 to vector<8x4xf32>
    %378 = arith.addf %377, %376 : vector<8x4xf32>
    %cst_134 = arith.constant -9.990000e-01 : f32
    %379 = vector.broadcast %cst_134 : f32 to vector<8x4xf32>
    %380 = arith.cmpf ole, %2, %379 : vector<8x4xf32>
    %cst_135 = arith.constant 9.990000e-01 : f32
    %381 = vector.broadcast %cst_135 : f32 to vector<8x4xf32>
    %382 = arith.cmpf oge, %2, %381 : vector<8x4xf32>
    %383 = arith.ori %380, %382 : vector<8x4xi1>
    %cst_136 = arith.constant 0.000000e+00 : f32
    %384 = vector.broadcast %cst_136 : f32 to vector<8x4xf32>
    %385 = arith.select %383, %384, %2 : vector<8x4xi1>, vector<8x4xf32>
    %c0_i32 = arith.constant 0 : i32
    %386 = vector.broadcast %c0_i32 : i32 to vector<8x4xi32>
    %387 = arith.cmpf ole, %319, %385 : vector<8x4xf32>
    %388 = arith.extui %387 : vector<8x4xi1> to vector<8x4xi32>
    %389 = arith.addi %386, %388 : vector<8x4xi32>
    %390 = arith.cmpf ole, %324, %385 : vector<8x4xf32>
    %391 = arith.extui %390 : vector<8x4xi1> to vector<8x4xi32>
    %392 = arith.addi %389, %391 : vector<8x4xi32>
    %393 = arith.cmpf ole, %329, %385 : vector<8x4xf32>
    %394 = arith.extui %393 : vector<8x4xi1> to vector<8x4xi32>
    %395 = arith.addi %392, %394 : vector<8x4xi32>
    %396 = arith.cmpf ole, %334, %385 : vector<8x4xf32>
    %397 = arith.extui %396 : vector<8x4xi1> to vector<8x4xi32>
    %398 = arith.addi %395, %397 : vector<8x4xi32>
    %399 = arith.cmpf ole, %339, %385 : vector<8x4xf32>
    %400 = arith.extui %399 : vector<8x4xi1> to vector<8x4xi32>
    %401 = arith.addi %398, %400 : vector<8x4xi32>
    %402 = arith.cmpf ole, %344, %385 : vector<8x4xf32>
    %403 = arith.extui %402 : vector<8x4xi1> to vector<8x4xi32>
    %404 = arith.addi %401, %403 : vector<8x4xi32>
    %405 = arith.cmpf ole, %349, %385 : vector<8x4xf32>
    %406 = arith.extui %405 : vector<8x4xi1> to vector<8x4xi32>
    %407 = arith.addi %404, %406 : vector<8x4xi32>
    %408 = arith.cmpf ole, %354, %385 : vector<8x4xf32>
    %409 = arith.extui %408 : vector<8x4xi1> to vector<8x4xi32>
    %410 = arith.addi %407, %409 : vector<8x4xi32>
    %c7_i32 = arith.constant 7 : i32
    %411 = vector.broadcast %c7_i32 : i32 to vector<8x4xi32>
    %412 = arith.minsi %410, %411 : vector<8x4xi32>
    %c0_i32_137 = arith.constant 0 : i32
    %413 = vector.broadcast %c0_i32_137 : i32 to vector<8x4xi32>
    %414 = arith.cmpi eq, %412, %413 : vector<8x4xi32>
    %c1_i32 = arith.constant 1 : i32
    %415 = vector.broadcast %c1_i32 : i32 to vector<8x4xi32>
    %416 = arith.cmpi eq, %412, %415 : vector<8x4xi32>
    %c2_i32 = arith.constant 2 : i32
    %417 = vector.broadcast %c2_i32 : i32 to vector<8x4xi32>
    %418 = arith.cmpi eq, %412, %417 : vector<8x4xi32>
    %c3_i32 = arith.constant 3 : i32
    %419 = vector.broadcast %c3_i32 : i32 to vector<8x4xi32>
    %420 = arith.cmpi eq, %412, %419 : vector<8x4xi32>
    %c4_i32 = arith.constant 4 : i32
    %421 = vector.broadcast %c4_i32 : i32 to vector<8x4xi32>
    %422 = arith.cmpi eq, %412, %421 : vector<8x4xi32>
    %c5_i32 = arith.constant 5 : i32
    %423 = vector.broadcast %c5_i32 : i32 to vector<8x4xi32>
    %424 = arith.cmpi eq, %412, %423 : vector<8x4xi32>
    %c6_i32 = arith.constant 6 : i32
    %425 = vector.broadcast %c6_i32 : i32 to vector<8x4xi32>
    %426 = arith.cmpi eq, %412, %425 : vector<8x4xi32>
    %c7_i32_138 = arith.constant 7 : i32
    %427 = vector.broadcast %c7_i32_138 : i32 to vector<8x4xi32>
    %428 = arith.cmpi eq, %412, %427 : vector<8x4xi32>
    %429 = arith.select %416, %321, %316 : vector<8x4xi1>, vector<8x4xf32>
    %430 = arith.select %418, %326, %429 : vector<8x4xi1>, vector<8x4xf32>
    %431 = arith.select %420, %331, %430 : vector<8x4xi1>, vector<8x4xf32>
    %432 = arith.select %422, %336, %431 : vector<8x4xi1>, vector<8x4xf32>
    %433 = arith.select %424, %341, %432 : vector<8x4xi1>, vector<8x4xf32>
    %434 = arith.select %426, %346, %433 : vector<8x4xi1>, vector<8x4xf32>
    %435 = arith.select %428, %351, %434 : vector<8x4xi1>, vector<8x4xf32>
    %436 = arith.select %416, %360, %357 : vector<8x4xi1>, vector<8x4xf32>
    %437 = arith.select %418, %363, %436 : vector<8x4xi1>, vector<8x4xf32>
    %438 = arith.select %420, %366, %437 : vector<8x4xi1>, vector<8x4xf32>
    %439 = arith.select %422, %369, %438 : vector<8x4xi1>, vector<8x4xf32>
    %440 = arith.select %424, %372, %439 : vector<8x4xi1>, vector<8x4xf32>
    %441 = arith.select %426, %375, %440 : vector<8x4xi1>, vector<8x4xf32>
    %442 = arith.select %428, %378, %441 : vector<8x4xi1>, vector<8x4xf32>
    %443 = arith.select %416, %98, %92 : vector<8x4xi1>, vector<8x4xf32>
    %444 = arith.select %418, %104, %443 : vector<8x4xi1>, vector<8x4xf32>
    %445 = arith.select %420, %110, %444 : vector<8x4xi1>, vector<8x4xf32>
    %446 = arith.select %422, %116, %445 : vector<8x4xi1>, vector<8x4xf32>
    %447 = arith.select %424, %122, %446 : vector<8x4xi1>, vector<8x4xf32>
    %448 = arith.select %426, %128, %447 : vector<8x4xi1>, vector<8x4xf32>
    %449 = arith.select %428, %134, %448 : vector<8x4xi1>, vector<8x4xf32>
    %450 = arith.select %416, %186, %180 : vector<8x4xi1>, vector<8x4xf32>
    %451 = arith.select %418, %192, %450 : vector<8x4xi1>, vector<8x4xf32>
    %452 = arith.select %420, %198, %451 : vector<8x4xi1>, vector<8x4xf32>
    %453 = arith.select %422, %204, %452 : vector<8x4xi1>, vector<8x4xf32>
    %454 = arith.select %424, %210, %453 : vector<8x4xi1>, vector<8x4xf32>
    %455 = arith.select %426, %216, %454 : vector<8x4xi1>, vector<8x4xf32>
    %456 = arith.select %428, %222, %455 : vector<8x4xi1>, vector<8x4xf32>
    %cst_139 = arith.constant 1.000000e+00 : f32
    %457 = vector.broadcast %cst_139 : f32 to vector<8x4xf32>
    %458 = arith.select %416, %235, %457 : vector<8x4xi1>, vector<8x4xf32>
    %459 = arith.select %418, %248, %458 : vector<8x4xi1>, vector<8x4xf32>
    %460 = arith.select %420, %261, %459 : vector<8x4xi1>, vector<8x4xf32>
    %461 = arith.select %422, %274, %460 : vector<8x4xi1>, vector<8x4xf32>
    %462 = arith.select %424, %287, %461 : vector<8x4xi1>, vector<8x4xf32>
    %463 = arith.select %426, %300, %462 : vector<8x4xi1>, vector<8x4xf32>
    %464 = arith.select %428, %313, %463 : vector<8x4xi1>, vector<8x4xf32>
    %465 = arith.select %414, %235, %457 : vector<8x4xi1>, vector<8x4xf32>
    %466 = arith.select %416, %248, %465 : vector<8x4xi1>, vector<8x4xf32>
    %467 = arith.select %418, %261, %466 : vector<8x4xi1>, vector<8x4xf32>
    %468 = arith.select %420, %274, %467 : vector<8x4xi1>, vector<8x4xf32>
    %469 = arith.select %422, %287, %468 : vector<8x4xi1>, vector<8x4xf32>
    %470 = arith.select %424, %300, %469 : vector<8x4xi1>, vector<8x4xf32>
    %471 = arith.select %426, %313, %470 : vector<8x4xi1>, vector<8x4xf32>
    %472 = arith.divf %456, %449 : vector<8x4xf32>
    %473 = arith.subf %385, %435 : vector<8x4xf32>
    %474 = arith.divf %473, %449 : vector<8x4xf32>
    %cst_140 = arith.constant 1.000000e+00 : f32
    %475 = vector.broadcast %cst_140 : f32 to vector<8x4xf32>
    %476 = arith.subf %475, %474 : vector<8x4xf32>
    %477 = arith.mulf %474, %476 : vector<8x4xf32>
    %478 = arith.mulf %474, %474 : vector<8x4xf32>
    %479 = arith.addf %471, %464 : vector<8x4xf32>
    %cst_141 = arith.constant 2.000000e+00 : f32
    %480 = vector.broadcast %cst_141 : f32 to vector<8x4xf32>
    %481 = arith.mulf %480, %472 : vector<8x4xf32>
    %482 = arith.subf %479, %481 : vector<8x4xf32>
    %483 = arith.mulf %482, %477 : vector<8x4xf32>
    %484 = arith.addf %472, %483 : vector<8x4xf32>
    %485 = arith.mulf %472, %478 : vector<8x4xf32>
    %486 = arith.mulf %464, %477 : vector<8x4xf32>
    %487 = arith.addf %485, %486 : vector<8x4xf32>
    %488 = arith.mulf %456, %487 : vector<8x4xf32>
    %489 = arith.divf %488, %484 : vector<8x4xf32>
    %490 = arith.addf %442, %489 : vector<8x4xf32>
    %491 = arith.select %383, %2, %490 : vector<8x4xi1>, vector<8x4xf32>
    %492 = math.log %472 : vector<8x4xf32>
    %cst_142 = arith.constant 2.000000e+00 : f32
    %493 = vector.broadcast %cst_142 : f32 to vector<8x4xf32>
    %494 = arith.mulf %493, %492 : vector<8x4xf32>
    %495 = arith.mulf %471, %478 : vector<8x4xf32>
    %cst_143 = arith.constant 2.000000e+00 : f32
    %496 = vector.broadcast %cst_143 : f32 to vector<8x4xf32>
    %497 = arith.mulf %496, %472 : vector<8x4xf32>
    %498 = arith.mulf %497, %477 : vector<8x4xf32>
    %499 = arith.addf %495, %498 : vector<8x4xf32>
    %500 = arith.mulf %464, %476 : vector<8x4xf32>
    %501 = arith.mulf %500, %476 : vector<8x4xf32>
    %502 = arith.addf %499, %501 : vector<8x4xf32>
    %503 = math.log %502 : vector<8x4xf32>
    %504 = arith.addf %494, %503 : vector<8x4xf32>
    %505 = math.log %484 : vector<8x4xf32>
    %cst_144 = arith.constant 2.000000e+00 : f32
    %506 = vector.broadcast %cst_144 : f32 to vector<8x4xf32>
    %507 = arith.mulf %506, %505 : vector<8x4xf32>
    %508 = arith.subf %504, %507 : vector<8x4xf32>
    %cst_145 = arith.constant 0.000000e+00 : f32
    %509 = vector.broadcast %cst_145 : f32 to vector<8x4xf32>
    %510 = arith.select %383, %509, %508 : vector<8x4xi1>, vector<8x4xf32>
    %c0_146 = arith.constant 0 : index
    %c0_147 = arith.constant 0 : index
    %511 = vector.load %arg4[%c0_146, %c0_147] : memref<4x8xf32, #tpu.memory_space<vmem>>, vector<4x8xf32>
    %cst_148 = arith.constant dense<0.000000e+00> : vector<8x8xf32>
    %512 = tpu.matmul %491, %511, %cst_148 {dimension_numbers = #tpu.dot_dimension_numbers<[1], [0], [0], [1], [0, 0, 1, 1], [], []>} : vector<8x4xf32>, vector<4x8xf32>, vector<8x8xf32> -> vector<8x8xf32>
    %c0_149 = arith.constant 0 : index
    %c0_150 = arith.constant 0 : index
    %513 = vector.load %arg5[%c0_149, %c0_150] : memref<4x8xf32, #tpu.memory_space<vmem>>, vector<4x8xf32>
    %cst_151 = arith.constant dense<0.000000e+00> : vector<8x8xf32>
    %514 = tpu.matmul %4, %513, %cst_151 {dimension_numbers = #tpu.dot_dimension_numbers<[1], [0], [0], [1], [0, 0, 1, 1], [], []>} : vector<8x4xf32>, vector<4x8xf32>, vector<8x8xf32> -> vector<8x8xf32>
    %515 = arith.addf %512, %514 : vector<8x8xf32>
    %c0_152 = arith.constant 0 : index
    %c0_153 = arith.constant 0 : index
    %516 = vector.load %arg12[%c0_152, %c0_153] : memref<8x8xf32, #tpu.memory_space<vmem>>, vector<8x8xf32>
    tpu.vector_store %arg12[%c0_152, %c0_153], %515 {strides = array<i32>} : memref<8x8xf32, #tpu.memory_space<vmem>>, vector<8x8xf32>,
    %cst_154 = arith.constant dense<0.000000e+00> : vector<8xf32>
    %517 = vector.multi_reduction <add>, %510, %cst_154 [1] : vector<8x4xf32> to vector<8xf32>
    %518 = vector.shape_cast %517 : vector<8xf32> to vector<8x1xf32>
    %c0_155 = arith.constant 0 : index
    %c0_156 = arith.constant 0 : index
    %519 = vector.load %arg13[%c0_155, %c0_156] : memref<8x1xf32, #tpu.memory_space<vmem>>, vector<8x1xf32>
    tpu.vector_store %arg13[%c0_155, %c0_156], %518 {strides = array<i32>} : memref<8x1xf32, #tpu.memory_space<vmem>>, vector<8x1xf32>,
    return
  }
  func.func @transform_0(%arg0: i32) -> (i32, i32) {
    %c0_i32 = arith.constant 0 : i32
    %c0_i32_0 = arith.constant 0 : i32
    return %arg0, %c0_i32 : i32, i32
  }
  func.func @transform_1(%arg0: i32) -> (i32, i32) {
    %c0_i32 = arith.constant 0 : i32
    %c0_i32_0 = arith.constant 0 : i32
    %c0_i32_1 = arith.constant 0 : i32
    return %c0_i32, %c0_i32_0 : i32, i32
  }
  func.func @transform_2(%arg0: i32) -> (i32, i32) {
    %c0_i32 = arith.constant 0 : i32
    %c0_i32_0 = arith.constant 0 : i32
    %c0_i32_1 = arith.constant 0 : i32
    return %c0_i32, %c0_i32_0 : i32, i32
  }
  func.func @transform_3(%arg0: i32) -> (i32, i32) {
    %c0_i32 = arith.constant 0 : i32
    %c0_i32_0 = arith.constant 0 : i32
    %c0_i32_1 = arith.constant 0 : i32
    return %c0_i32, %c0_i32_0 : i32, i32
  }
  func.func @transform_4(%arg0: i32) -> (i32, i32) {
    %c0_i32 = arith.constant 0 : i32
    %c0_i32_0 = arith.constant 0 : i32
    %c0_i32_1 = arith.constant 0 : i32
    return %c0_i32, %c0_i32_0 : i32, i32
  }
  func.func @transform_5(%arg0: i32) -> (i32, i32) {
    %c0_i32 = arith.constant 0 : i32
    %c0_i32_0 = arith.constant 0 : i32
    %c0_i32_1 = arith.constant 0 : i32
    return %c0_i32, %c0_i32_0 : i32, i32
  }
  func.func @transform_6(%arg0: i32) -> (i32, i32) {
    %c0_i32 = arith.constant 0 : i32
    %c0_i32_0 = arith.constant 0 : i32
    %c0_i32_1 = arith.constant 0 : i32
    return %c0_i32, %c0_i32_0 : i32, i32
  }
  func.func @transform_7(%arg0: i32) -> (i32, i32) {
    %c0_i32 = arith.constant 0 : i32
    %c0_i32_0 = arith.constant 0 : i32
    %c0_i32_1 = arith.constant 0 : i32
    return %c0_i32, %c0_i32_0 : i32, i32
  }
  func.func @transform_8(%arg0: i32) -> (i32, i32) {
    %c0_i32 = arith.constant 0 : i32
    %c0_i32_0 = arith.constant 0 : i32
    %c0_i32_1 = arith.constant 0 : i32
    return %c0_i32, %c0_i32_0 : i32, i32
  }
  func.func @transform_9(%arg0: i32) -> (i32, i32) {
    %c0_i32 = arith.constant 0 : i32
    %c0_i32_0 = arith.constant 0 : i32
    %c0_i32_1 = arith.constant 0 : i32
    return %c0_i32, %c0_i32_0 : i32, i32
  }
  func.func @transform_10(%arg0: i32) -> (i32, i32) {
    %c0_i32 = arith.constant 0 : i32
    %c0_i32_0 = arith.constant 0 : i32
    %c0_i32_1 = arith.constant 0 : i32
    return %c0_i32, %c0_i32_0 : i32, i32
  }
  func.func @transform_11(%arg0: i32) -> (i32, i32) {
    %c0_i32 = arith.constant 0 : i32
    %c0_i32_0 = arith.constant 0 : i32
    return %arg0, %c0_i32 : i32, i32
  }
  func.func @transform_12(%arg0: i32) -> (i32, i32) {
    %c0_i32 = arith.constant 0 : i32
    %c0_i32_0 = arith.constant 0 : i32
    return %arg0, %c0_i32 : i32, i32
  }
}

</mosaic_0001>

<llo_original>
// kernel: tpu_custom_call.1
$region0: #{tpu_custom_call.1}
  #allocation0 [shape = 'u32[]', space=smem, size = 0x4, offset = 0x4, fixed_abs, tag = 'smem constant byte address 0x4 - core index']
  #allocation1 [shape = 'u32[144,128]{1,0:T(1,128)}', space=vmem, size = 0x12000, scoped, tag = 'internal scratch']
  %s0 = inlined_call_operand.vmem [shape: f32[16,8], index: 0, kind: input, shape index: {}]
  %s1 = inlined_call_operand.vmem [shape: f32[8,4], index: 1, kind: input, shape index: {}]
  %s2 = inlined_call_operand.vmem [shape: f32[8,4], index: 2, kind: input, shape index: {}]
  %s3 = inlined_call_operand.hbm [shape: f32[4,8], index: 3, kind: input, shape index: {}]
  %s4 = inlined_call_operand.hbm [shape: f32[4,8], index: 4, kind: input, shape index: {}]
  %s5 = inlined_call_operand.hbm [shape: f32[4,32], index: 5, kind: input, shape index: {}]
  %s6 = inlined_call_operand.vmem [shape: f32[1,32], index: 6, kind: input, shape index: {}]
  %s7 = inlined_call_operand.vmem [shape: f32[32,32], index: 7, kind: input, shape index: {}]
  %s8 = inlined_call_operand.vmem [shape: f32[1,32], index: 8, kind: input, shape index: {}]
  %s9 = inlined_call_operand.vmem [shape: f32[32,92], index: 9, kind: input, shape index: {}]
  %s10 = inlined_call_operand.vmem [shape: f32[1,92], index: 10, kind: input, shape index: {}]
  %s11 = inlined_call_operand.vmem [shape: f32[16,8], index: 11, kind: output, shape index: {0}]
  %s12 = inlined_call_operand.vmem [shape: f32[16,1], index: 12, kind: output, shape index: {1}]
  %13 = xla_tuple %s11, %s12
  %s14 = sld [smem:[#allocation0]]
  $region97: #{tpu_custom_call.1} parent=0
    _
  %s16 = ssub.s32 1, %s14
  %s17 = scalar_select 0, %s16, %s14
  $region1: #{tpu_custom_call.1} parent=0
    #allocation2 [shape = 'u8[2048]{0}', space=vmem, size = 0x800, scoped, tag = 'input window, operand 3, single buffered']
    #allocation3 [shape = 's32[2]{0}', space=sflag, size = 0x8, scoped, tag = 'scoped memory for tpu_custom_call.1']
    #allocation4 [shape = 'u8[2048]{0}', space=vmem, size = 0x800, scoped, tag = 'input window, operand 4, single buffered']
    #allocation5 [shape = 's32[1]{0}', space=sflag, size = 0x4, scoped, tag = 'scoped memory for tpu_custom_call.1']
    #allocation6 [shape = 'u8[2048]{0}', space=vmem, size = 0x800, scoped, tag = 'input window, operand 5, single buffered']
    %18 = vsyncpa [#allocation3], 0
    %19 = vsyncpa [#allocation5], 0
    loop: start=0, step=1, limit=4
    $region2: #{tpu_custom_call.1} parent=1 // loop_pre_header
      _
    $region3: #{tpu_custom_call.1} parent=1 // loop_header
      %s21 = sphi 0, %s25
      %p22 = scmp.ge.s32.totalorder %s21, 4
      %s31 = sphi 0, %s33
      %s34 = sphi 0, %s31
      %s35 = sphi 0, %s34
      %s51 = sphi 0, %s35
      %s55 = sphi 0, %s55
      %s57 = sphi 0, %s55
      %s58 = sphi 0, %s57
      %s72 = sphi 0, %s58
      %s76 = sphi 0, %s76
      %s78 = sphi 0, %s76
      %s79 = sphi 0, %s78
      %s93 = sphi 0, %s79
      %s97 = sphi 0, %s97
      %s99 = sphi 0, %s97
      %s100 = sphi 0, %s99
      %s114 = sphi 0, %s100
      %s118 = sphi 0, %s118
      %s120 = sphi 0, %s118
      %s121 = sphi 0, %s120
      %s135 = sphi 0, %s121
      %s139 = sphi 0, %s139
      %s141 = sphi 0, %s139
      %s142 = sphi 0, %s141
      %s156 = sphi 0, %s142
      %s160 = sphi 0, %s160
      %s162 = sphi 0, %s160
      %s163 = sphi 0, %s162
      %s177 = sphi 0, %s163
      %s181 = sphi 0, %s181
      %s183 = sphi 0, %s181
      %s184 = sphi 0, %s183
      %s198 = sphi 0, %s184
      %s202 = sphi 0, %s202
      %s204 = sphi 0, %s202
      %s205 = sphi 0, %s204
      %s219 = sphi 0, %s205
      %s223 = sphi 0, %s223
      %s225 = sphi 0, %s223
      %s226 = sphi 0, %s225
      %s240 = sphi 0, %s226
      %s244 = sphi 0, %s244
      %s246 = sphi 0, %s244
      %s247 = sphi 0, %s246
      %s261 = sphi 0, %s247
      %s267 = sphi 0, %s269
      %s270 = sphi 0, %s267
      %s271 = sphi 0, %s270
      %s287 = sphi 0, %s271
      %s293 = sphi 0, %s295
      %s296 = sphi 0, %s293
      %s297 = sphi 0, %s296
      %s313 = sphi 0, %s297
    $region4: #{tpu_custom_call.1} parent=1 // loop_header_branch
      %24 = sbr.rel (%p22) target = $region8
    $region5: #{tpu_custom_call.1} parent=1 // loop_body
      %s26 = ssub.s32 %s21, 1
      %s27 = ssub.s32 %s21, 2
      %s28 = sadd.s32 %s21, 1
      %s29 = ssub.s32 %s21, %s28
      %p30 = scmp.eq.s32.totalorder %s29, 0
      %s32 = sadd.s32 %s31, 1
      %s33 = scalar_select %p30, %s31, %s32
      %p36 = pneg %p30
      %p37 = scmp.eq.s32.totalorder %s21, 1
      %p38 = por %p36, %p37
      %p39 = scmp.ne.s32.totalorder %s31, %s34
      %p40 = scmp.eq.s32.totalorder %s21, 0
      %p41 = por %p39, %p40
      %p42 = scmp.ne.s32.totalorder %s31, %s34
      %p43 = scmp.eq.s32.totalorder %s26, 1
      %p44 = por %p42, %p43
      %p45 = scmp.ne.s32.totalorder %s34, %s35
      %p46 = scmp.eq.s32.totalorder %s26, 0
      %p47 = por %p45, %p46
      %p48 = scmp.ne.s32.totalorder %s34, %s35
      %p49 = scmp.eq.s32.totalorder %s27, 1
      %p50 = por %p48, %p49
      %p52 = scmp.ne.s32.totalorder %s35, %s51
      %p53 = scmp.eq.s32.totalorder %s27, 0
      %p54 = por %p52, %p53
      %s56 = sadd.s32 %s55, 1
      %p59 = scmp.eq.s32.totalorder %s21, 1
      %p60 = scmp.ne.s32.totalorder %s55, %s57
      %p61 = scmp.eq.s32.totalorder %s21, 0
      %p62 = por %p60, %p61
      %p63 = scmp.ne.s32.totalorder %s55, %s57
      %p64 = scmp.eq.s32.totalorder %s26, 1
      %p65 = por %p63, %p64
      %p66 = scmp.ne.s32.totalorder %s57, %s58
      %p67 = scmp.eq.s32.totalorder %s26, 0
      %p68 = por %p66, %p67
      %p69 = scmp.ne.s32.totalorder %s57, %s58
      %p70 = scmp.eq.s32.totalorder %s27, 1
      %p71 = por %p69, %p70
      %p73 = scmp.ne.s32.totalorder %s58, %s72
      %p74 = scmp.eq.s32.totalorder %s27, 0
      %p75 = por %p73, %p74
      %s77 = sadd.s32 %s76, 1
      %p80 = scmp.eq.s32.totalorder %s21, 1
      %p81 = scmp.ne.s32.totalorder %s76, %s78
      %p82 = scmp.eq.s32.totalorder %s21, 0
      %p83 = por %p81, %p82
      %p84 = scmp.ne.s32.totalorder %s76, %s78
      %p85 = scmp.eq.s32.totalorder %s26, 1
      %p86 = por %p84, %p85
      %p87 = scmp.ne.s32.totalorder %s78, %s79
      %p88 = scmp.eq.s32.totalorder %s26, 0
      %p89 = por %p87, %p88
      %p90 = scmp.ne.s32.totalorder %s78, %s79
      %p91 = scmp.eq.s32.totalorder %s27, 1
      %p92 = por %p90, %p91
      %p94 = scmp.ne.s32.totalorder %s79, %s93
      %p95 = scmp.eq.s32.totalorder %s27, 0
      %p96 = por %p94, %p95
      %s98 = sadd.s32 %s97, 1
      %p101 = scmp.eq.s32.totalorder %s21, 1
      %p102 = scmp.ne.s32.totalorder %s97, %s99
      %p103 = scmp.eq.s32.totalorder %s21, 0
      %p104 = por %p102, %p103
      %p105 = scmp.ne.s32.totalorder %s97, %s99
      %p106 = scmp.eq.s32.totalorder %s26, 1
      %p107 = por %p105, %p106
      %p108 = scmp.ne.s32.totalorder %s99, %s100
      %p109 = scmp.eq.s32.totalorder %s26, 0
      %p110 = por %p108, %p109
      %p111 = scmp.ne.s32.totalorder %s99, %s100
      %p112 = scmp.eq.s32.totalorder %s27, 1
      %p113 = por %p111, %p112
      %p115 = scmp.ne.s32.totalorder %s100, %s114
      %p116 = scmp.eq.s32.totalorder %s27, 0
      %p117 = por %p115, %p116
      %s119 = sadd.s32 %s118, 1
      %p122 = scmp.eq.s32.totalorder %s21, 1
      %p123 = scmp.ne.s32.totalorder %s118, %s120
      %p124 = scmp.eq.s32.totalorder %s21, 0
      %p125 = por %p123, %p124
      %p126 = scmp.ne.s32.totalorder %s118, %s120
      %p127 = scmp.eq.s32.totalorder %s26, 1
      %p128 = por %p126, %p127
      %p129 = scmp.ne.s32.totalorder %s120, %s121
      %p130 = scmp.eq.s32.totalorder %s26, 0
      %p131 = por %p129, %p130
      %p132 = scmp.ne.s32.totalorder %s120, %s121
      %p133 = scmp.eq.s32.totalorder %s27, 1
      %p134 = por %p132, %p133
      %p136 = scmp.ne.s32.totalorder %s121, %s135
      %p137 = scmp.eq.s32.totalorder %s27, 0
      %p138 = por %p136, %p137
      %s140 = sadd.s32 %s139, 1
      %p143 = scmp.eq.s32.totalorder %s21, 1
      %p144 = scmp.ne.s32.totalorder %s139, %s141
      %p145 = scmp.eq.s32.totalorder %s21, 0
      %p146 = por %p144, %p145
      %p147 = scmp.ne.s32.totalorder %s139, %s141
      %p148 = scmp.eq.s32.totalorder %s26, 1
      %p149 = por %p147, %p148
      %p150 = scmp.ne.s32.totalorder %s141, %s142
      %p151 = scmp.eq.s32.totalorder %s26, 0
      %p152 = por %p150, %p151
      %p153 = scmp.ne.s32.totalorder %s141, %s142
      %p154 = scmp.eq.s32.totalorder %s27, 1
      %p155 = por %p153, %p154
      %p157 = scmp.ne.s32.totalorder %s142, %s156
      %p158 = scmp.eq.s32.totalorder %s27, 0
      %p159 = por %p157, %p158
      %s161 = sadd.s32 %s160, 1
      %p164 = scmp.eq.s32.totalorder %s21, 1
      %p165 = scmp.ne.s32.totalorder %s160, %s162
      %p166 = scmp.eq.s32.totalorder %s21, 0
      %p167 = por %p165, %p166
      %p168 = scmp.ne.s32.totalorder %s160, %s162
      %p169 = scmp.eq.s32.totalorder %s26, 1
      %p170 = por %p168, %p169
      %p171 = scmp.ne.s32.totalorder %s162, %s163
      %p172 = scmp.eq.s32.totalorder %s26, 0
      %p173 = por %p171, %p172
      %p174 = scmp.ne.s32.totalorder %s162, %s163
      %p175 = scmp.eq.s32.totalorder %s27, 1
      %p176 = por %p174, %p175
      %p178 = scmp.ne.s32.totalorder %s163, %s177
      %p179 = scmp.eq.s32.totalorder %s27, 0
      %p180 = por %p178, %p179
      %s182 = sadd.s32 %s181, 1
      %p185 = scmp.eq.s32.totalorder %s21, 1
      %p186 = scmp.ne.s32.totalorder %s181, %s183
      %p187 = scmp.eq.s32.totalorder %s21, 0
      %p188 = por %p186, %p187
      %p189 = scmp.ne.s32.totalorder %s181, %s183
      %p190 = scmp.eq.s32.totalorder %s26, 1
      %p191 = por %p189, %p190
      %p192 = scmp.ne.s32.totalorder %s183, %s184
      %p193 = scmp.eq.s32.totalorder %s26, 0
      %p194 = por %p192, %p193
      %p195 = scmp.ne.s32.totalorder %s183, %s184
      %p196 = scmp.eq.s32.totalorder %s27, 1
      %p197 = por %p195, %p196
      %p199 = scmp.ne.s32.totalorder %s184, %s198
      %p200 = scmp.eq.s32.totalorder %s27, 0
      %p201 = por %p199, %p200
      %s203 = sadd.s32 %s202, 1
      %p206 = scmp.eq.s32.totalorder %s21, 1
      %p207 = scmp.ne.s32.totalorder %s202, %s204
      %p208 = scmp.eq.s32.totalorder %s21, 0
      %p209 = por %p207, %p208
      %p210 = scmp.ne.s32.totalorder %s202, %s204
      %p211 = scmp.eq.s32.totalorder %s26, 1
      %p212 = por %p210, %p211
      %p213 = scmp.ne.s32.totalorder %s204, %s205
      %p214 = scmp.eq.s32.totalorder %s26, 0
      %p215 = por %p213, %p214
      %p216 = scmp.ne.s32.totalorder %s204, %s205
      %p217 = scmp.eq.s32.totalorder %s27, 1
      %p218 = por %p216, %p217
      %p220 = scmp.ne.s32.totalorder %s205, %s219
      %p221 = scmp.eq.s32.totalorder %s27, 0
      %p222 = por %p220, %p221
      %s224 = sadd.s32 %s223, 1
      %p227 = scmp.eq.s32.totalorder %s21, 1
      %p228 = scmp.ne.s32.totalorder %s223, %s225
      %p229 = scmp.eq.s32.totalorder %s21, 0
      %p230 = por %p228, %p229
      %p231 = scmp.ne.s32.totalorder %s223, %s225
      %p232 = scmp.eq.s32.totalorder %s26, 1
      %p233 = por %p231, %p232
      %p234 = scmp.ne.s32.totalorder %s225, %s226
      %p235 = scmp.eq.s32.totalorder %s26, 0
      %p236 = por %p234, %p235
      %p237 = scmp.ne.s32.totalorder %s225, %s226
      %p238 = scmp.eq.s32.totalorder %s27, 1
      %p239 = por %p237, %p238
      %p241 = scmp.ne.s32.totalorder %s226, %s240
      %p242 = scmp.eq.s32.totalorder %s27, 0
      %p243 = por %p241, %p242
      %s245 = sadd.s32 %s244, 1
      %p248 = scmp.eq.s32.totalorder %s21, 1
      %p249 = scmp.ne.s32.totalorder %s244, %s246
      %p250 = scmp.eq.s32.totalorder %s21, 0
      %p251 = por %p249, %p250
      %p252 = scmp.ne.s32.totalorder %s244, %s246
      %p253 = scmp.eq.s32.totalorder %s26, 1
      %p254 = por %p252, %p253
      %p255 = scmp.ne.s32.totalorder %s246, %s247
      %p256 = scmp.eq.s32.totalorder %s26, 0
      %p257 = por %p255, %p256
      %p258 = scmp.ne.s32.totalorder %s246, %s247
      %p259 = scmp.eq.s32.totalorder %s27, 1
      %p260 = por %p258, %p259
      %p262 = scmp.ne.s32.totalorder %s247, %s261
      %p263 = scmp.eq.s32.totalorder %s27, 0
      %p264 = por %p262, %p263
      %s265 = ssub.s32 %s21, %s28
      %p266 = scmp.eq.s32.totalorder %s265, 0
      %s268 = sadd.s32 %s267, 1
      %s269 = scalar_select %p266, %s267, %s268
      %p272 = pneg %p266
      %p273 = scmp.eq.s32.totalorder %s21, 1
      %p274 = por %p272, %p273
      %p275 = scmp.ne.s32.totalorder %s267, %s270
      %p276 = scmp.eq.s32.totalorder %s21, 0
      %p277 = por %p275, %p276
      %p278 = scmp.ne.s32.totalorder %s267, %s270
      %p279 = scmp.eq.s32.totalorder %s26, 1
      %p280 = por %p278, %p279
      %p281 = scmp.ne.s32.totalorder %s270, %s271
      %p282 = scmp.eq.s32.totalorder %s26, 0
      %p283 = por %p281, %p282
      %p284 = scmp.ne.s32.totalorder %s270, %s271
      %p285 = scmp.eq.s32.totalorder %s27, 1
      %p286 = por %p284, %p285
      %p288 = scmp.ne.s32.totalorder %s271, %s287
      %p289 = scmp.eq.s32.totalorder %s27, 0
      %p290 = por %p288, %p289
      %s291 = ssub.s32 %s21, %s28
      %p292 = scmp.eq.s32.totalorder %s291, 0
      %s294 = sadd.s32 %s293, 1
      %s295 = scalar_select %p292, %s293, %s294
      %p298 = pneg %p292
      %p299 = scmp.eq.s32.totalorder %s21, 1
      %p300 = por %p298, %p299
      %p301 = scmp.ne.s32.totalorder %s293, %s296
      %p302 = scmp.eq.s32.totalorder %s21, 0
      %p303 = por %p301, %p302
      %p304 = scmp.ne.s32.totalorder %s293, %s296
      %p305 = scmp.eq.s32.totalorder %s26, 1
      %p306 = por %p304, %p305
      %p307 = scmp.ne.s32.totalorder %s296, %s297
      %p308 = scmp.eq.s32.totalorder %s26, 0
      %p309 = por %p307, %p308
      %p310 = scmp.ne.s32.totalorder %s296, %s297
      %p311 = scmp.eq.s32.totalorder %s27, 1
      %p312 = por %p310, %p311
      %p314 = scmp.ne.s32.totalorder %s297, %s313
      %p315 = scmp.eq.s32.totalorder %s27, 0
      %p316 = por %p314, %p315
      %p317 = scmp.le.s32.totalorder 1, %s21
      %p318 = scmp.lt.s32.totalorder %s21, 3
      %p319 = pnand %p317, %p318
      %p320 = pneg %p319
      // Predicated region
      $region9: #{tpu_custom_call.1} parent=5 // pred_check
        _
      $region10: #{tpu_custom_call.1} parent=5 // pred_check_branch
        %322 = sbr.rel (%p319) target = $region12
      $region11: #{tpu_custom_call.1} parent=5 // pred_region
        %s323 = ssub.s32 %s21, 1
        // Predicated region
        $region13: #{tpu_custom_call.1} parent=11 // pred_check
          %p324 = pneg %p68
        $region14: #{tpu_custom_call.1} parent=11 // pred_check_branch
          %326 = sbr.rel (%p324) target = $region16
        $region15: #{tpu_custom_call.1} parent=11 // pred_region
          _
        $region16: #{tpu_custom_call.1} parent=11 // pred_fallthru
          _
        // Predicated region
        $region17: #{tpu_custom_call.1} parent=11 // pred_check
          %p327 = pneg %p89
        $region18: #{tpu_custom_call.1} parent=11 // pred_check_branch
          %329 = sbr.rel (%p327) target = $region20
        $region19: #{tpu_custom_call.1} parent=11 // pred_region
          _
        $region20: #{tpu_custom_call.1} parent=11 // pred_fallthru
          _
        // Predicated region
        $region21: #{tpu_custom_call.1} parent=11 // pred_check
          %p330 = pneg %p110
        $region22: #{tpu_custom_call.1} parent=11 // pred_check_branch
          %332 = sbr.rel (%p330) target = $region24
        $region23: #{tpu_custom_call.1} parent=11 // pred_region
          %s334 = ssub.s32 64, 64
          %335 = vsyncadd [#allocation3], %s334
          %s337 = sshll.u32 [#allocation2], 4
          %s338 = int_to_ptr.vmem [resolvable:$true] %s337
          %340 = dma.hbm_to_vmem [thread:$0]  %s3, 64, %s338, [#allocation3]
        $region24: #{tpu_custom_call.1} parent=11 // pred_fallthru
          _
        // Predicated region
        $region25: #{tpu_custom_call.1} parent=11 // pred_check
          %p341 = pneg %p131
        $region26: #{tpu_custom_call.1} parent=11 // pred_check_branch
          %343 = sbr.rel (%p341) target = $region28
        $region27: #{tpu_custom_call.1} parent=11 // pred_region
          %s345 = ssub.s32 64, 64
          %346 = vsyncadd [#allocation5], %s345
          %s348 = sshll.u32 [#allocation4], 4
          %s349 = int_to_ptr.vmem [resolvable:$true] %s348
          %351 = dma.hbm_to_vmem [thread:$0]  %s4, 64, %s349, [#allocation5]
        $region28: #{tpu_custom_call.1} parent=11 // pred_fallthru
          _
        // Predicated region
        $region29: #{tpu_custom_call.1} parent=11 // pred_check
          %p352 = pneg %p152
        $region30: #{tpu_custom_call.1} parent=11 // pred_check_branch
          %354 = sbr.rel (%p352) target = $region32
        $region31: #{tpu_custom_call.1} parent=11 // pred_region
          %s356 = ssub.s32 64, 64
          %357 = vsyncadd [#allocation5], %s356
          %s359 = sshll.u32 [#allocation6], 4
          %s360 = int_to_ptr.vmem [resolvable:$true] %s359
          %362 = dma.hbm_to_vmem [thread:$0]  %s5, 64, %s360, [#allocation5]
        $region32: #{tpu_custom_call.1} parent=11 // pred_fallthru
          _
        // Predicated region
        $region33: #{tpu_custom_call.1} parent=11 // pred_check
          %p363 = pneg %p173
        $region34: #{tpu_custom_call.1} parent=11 // pred_check_branch
          %365 = sbr.rel (%p363) target = $region36
        $region35: #{tpu_custom_call.1} parent=11 // pred_region
          _
        $region36: #{tpu_custom_call.1} parent=11 // pred_fallthru
          _
        // Predicated region
        $region37: #{tpu_custom_call.1} parent=11 // pred_check
          %p366 = pneg %p194
        $region38: #{tpu_custom_call.1} parent=11 // pred_check_branch
          %368 = sbr.rel (%p366) target = $region40
        $region39: #{tpu_custom_call.1} parent=11 // pred_region
          _
        $region40: #{tpu_custom_call.1} parent=11 // pred_fallthru
          _
        // Predicated region
        $region41: #{tpu_custom_call.1} parent=11 // pred_check
          %p369 = pneg %p215
        $region42: #{tpu_custom_call.1} parent=11 // pred_check_branch
          %371 = sbr.rel (%p369) target = $region44
        $region43: #{tpu_custom_call.1} parent=11 // pred_region
          _
        $region44: #{tpu_custom_call.1} parent=11 // pred_fallthru
          _
        // Predicated region
        $region45: #{tpu_custom_call.1} parent=11 // pred_check
          %p372 = pneg %p236
        $region46: #{tpu_custom_call.1} parent=11 // pred_check_branch
          %374 = sbr.rel (%p372) target = $region48
        $region47: #{tpu_custom_call.1} parent=11 // pred_region
          _
        $region48: #{tpu_custom_call.1} parent=11 // pred_fallthru
          _
        // Predicated region
        $region49: #{tpu_custom_call.1} parent=11 // pred_check
          %p375 = pneg %p257
        $region50: #{tpu_custom_call.1} parent=11 // pred_check_branch
          %377 = sbr.rel (%p375) target = $region52
        $region51: #{tpu_custom_call.1} parent=11 // pred_region
          _
        $region52: #{tpu_custom_call.1} parent=11 // pred_fallthru
          _
      $region12: #{tpu_custom_call.1} parent=5 // pred_fallthru
        _
      %p378 = scmp.lt.s32.totalorder %s21, 2
      // Predicated region
      $region53: #{tpu_custom_call.1} parent=5 // pred_check
        %p379 = pneg %p378
      $region54: #{tpu_custom_call.1} parent=5 // pred_check_branch
        %381 = sbr.rel (%p379) target = $region56
      $region55: #{tpu_custom_call.1} parent=5 // pred_region
        // Predicated region
        $region57: #{tpu_custom_call.1} parent=55 // pred_check
          %p382 = pneg %p41
        $region58: #{tpu_custom_call.1} parent=55 // pred_check_branch
          %384 = sbr.rel (%p382) target = $region60
        $region59: #{tpu_custom_call.1} parent=55 // pred_region
          %p385 = scmp.lt.s32.totalorder %s21, 1
          %s386 = scalar_select %p385, %s21, 1
          %s387 = smul.addr %s386, 8
          %s388 = scalar_lea.vmem %s0, %s387
        $region60: #{tpu_custom_call.1} parent=55 // pred_fallthru
          _
      $region56: #{tpu_custom_call.1} parent=5 // pred_fallthru
        _
      %p389 = scmp.le.s32.totalorder 1, %s21
      %p390 = scmp.lt.s32.totalorder %s21, 3
      %p391 = pnand %p389, %p390
      %p392 = pneg %p391
      // Predicated region
      $region61: #{tpu_custom_call.1} parent=5 // pred_check
        _
      $region62: #{tpu_custom_call.1} parent=5 // pred_check_branch
        %394 = sbr.rel (%p391) target = $region64
      $region63: #{tpu_custom_call.1} parent=5 // pred_region
        %s395 = ssub.s32 %s21, 1
        // Predicated region
        $region65: #{tpu_custom_call.1} parent=63 // pred_check
          %p396 = pneg %p110
        $region66: #{tpu_custom_call.1} parent=63 // pred_check_branch
          %398 = sbr.rel (%p396) target = $region68
        $region67: #{tpu_custom_call.1} parent=63 // pred_region
          %399 = dma.done [#allocation3], 64
        $region68: #{tpu_custom_call.1} parent=63 // pred_fallthru
          _
        // Predicated region
        $region69: #{tpu_custom_call.1} parent=63 // pred_check
          %p400 = pneg %p131
        $region70: #{tpu_custom_call.1} parent=63 // pred_check_branch
          %402 = sbr.rel (%p400) target = $region72
        $region71: #{tpu_custom_call.1} parent=63 // pred_region
          %403 = dma.done [#allocation5], 64
        $region72: #{tpu_custom_call.1} parent=63 // pred_fallthru
          _
        // Predicated region
        $region73: #{tpu_custom_call.1} parent=63 // pred_check
          %p404 = pneg %p152
        $region74: #{tpu_custom_call.1} parent=63 // pred_check_branch
          %406 = sbr.rel (%p404) target = $region76
        $region75: #{tpu_custom_call.1} parent=63 // pred_region
          %407 = dma.done [#allocation5], 64
        $region76: #{tpu_custom_call.1} parent=63 // pred_fallthru
          _
        %p408 = scmp.lt.s32.totalorder %s26, 1
        %s409 = scalar_select %p408, %s26, 1
        %s410 = smul.addr %s409, 8
        %s411 = scalar_lea.vmem %s0, %s410
        %p412 = pneg %p47
        %p413 = pneg %p44
        %p414 = pneg %p68
        %p415 = pneg %p65
        %p416 = pneg %p89
        %p417 = pneg %p86
        %p418 = pneg %p110
        %p419 = pneg %p107
        %p420 = pneg %p131
        %p421 = pneg %p128
        %p422 = pneg %p152
        %p423 = pneg %p149
        %p424 = pneg %p173
        %p425 = pneg %p170
        %p426 = pneg %p194
        %p427 = pneg %p191
        %p428 = pneg %p215
        %p429 = pneg %p212
        %p430 = pneg %p236
        %p431 = pneg %p233
        %p432 = pneg %p257
        %p433 = pneg %p254
        %p434 = pneg %p283
        %p435 = pneg %p280
        %p436 = scmp.lt.s32.totalorder %s26, 1
        %s437 = scalar_select %p436, %s26, 1
        %s438 = smul.addr %s437, 8
        %s439 = scalar_lea.vmem %s11, %s438
        %p440 = pneg %p309
        %p441 = pneg %p306
        %p442 = scmp.lt.s32.totalorder %s26, 1
        %s443 = scalar_select %p442, %s26, 1
        %s444 = smul.addr %s443, 8
        %s445 = scalar_lea.vmem %s12, %s444
        %p446 = scmp.lt.s32.totalorder %s26, 1
        %s447 = scalar_select %p446, %s26, 1
        %s448 = smul.addr %s447, 8
        %s449 = scalar_lea.vmem %s0, %s448
        %p450 = scmp.lt.s32.totalorder %s26, 1
        %s451 = scalar_select %p450, %s26, 1
        %s452 = smul.addr %s451, 8
        %s453 = scalar_lea.vmem %s11, %s452
        %p454 = scmp.lt.s32.totalorder %s26, 1
        %s455 = scalar_select %p454, %s26, 1
        %s456 = smul.addr %s455, 8
        %s457 = scalar_lea.vmem %s12, %s456
        %v458 = vld [vmem:[%s449] sm:$0xff]
        %v459 = vld [vmem:[%s1] sm:$0xff]
        %vm460 = vcmask 64512
        %v462 = vsel %vm460, %v458, 0
        %464 = vmatprep.subr.mxu0 0.0
        %465 = vmatpush1.msra.mxu0 %v459
        %466 = vmatprep.subr.mxu0 0.0
        %467 = vmatpush1.msra.mxu0 0.0
        %468 = vmatprep.subr.mxu0 0.0
        %469 = vmatpush1.msra.mxu0 0.0
        %470 = vmatprep.subr.mxu0 0.0
        %471 = vmatpush1.msra.mxu0 0.0
        %472 = vmatprep.subr.mxu0 0.0
        %473 = vmatpush1.msra.mxu0 0.0
        %474 = vmatprep.subr.mxu0 0.0
        %475 = vmatpush1.msra.mxu0 0.0
        %476 = vmatprep.subr.mxu0 0.0
        %477 = vmatpush1.msra.mxu0 0.0
        %478 = vmatprep.subr.mxu0 0.0
        %479 = vmatpush1.msra.mxu0 0.0
        %480 = vmatprep.subr.mxu0 0.0
        %481 = vmatpush1.msra.mxu0 0.0
        %482 = vmatprep.subr.mxu0 0.0
        %483 = vmatpush1.msra.mxu0 0.0
        %484 = vmatprep.subr.mxu0 0.0
        %485 = vmatpush1.msra.mxu0 0.0
        %486 = vmatprep.subr.mxu0 0.0
        %487 = vmatpush1.msra.mxu0 0.0
        %488 = vmatprep.subr.mxu0 0.0
        %489 = vmatpush1.msra.mxu0 0.0
        %490 = vmatprep.subr.mxu0 0.0
        %491 = vmatpush1.msra.mxu0 0.0
        %492 = vmatprep.subr.mxu0 0.0
        %493 = vmatpush1.msra.mxu0 0.0
        %494 = vmatprep.subr.mxu0 0.0
        %495 = vmatpush1.msra.mxu0 0.0
        %496 = vmatprep.subr.mxu0 0.0
        %497 = vmatpush1.msra.mxu0 0.0
        %498 = vmatprep.subr.mxu0 0.0
        %499 = vmatpush1.msra.mxu0 0.0
        %500 = vmatprep.subr.mxu0 0.0
        %501 = vmatpush1.msra.mxu0 0.0
        %502 = vmatprep.subr.mxu0 0.0
        %503 = vmatpush1.msra.mxu0 0.0
        %504 = vmatprep.subr.mxu0 0.0
        %505 = vmatpush1.msra.mxu0 0.0
        %506 = vmatprep.subr.mxu0 0.0
        %507 = vmatpush1.msra.mxu0 0.0
        %508 = vmatprep.subr.mxu0 0.0
        %509 = vmatpush1.msra.mxu0 0.0
        %510 = vmatprep.subr.mxu0 0.0
        %511 = vmatpush1.msra.mxu0 0.0
        %512 = vmatprep.subr.mxu0 0.0
        %513 = vmatpush1.msra.mxu0 0.0
        %514 = vmatprep.subr.mxu0 0.0
        %515 = vmatpush1.msra.mxu0 0.0
        %516 = vmatprep.subr.mxu0 0.0
        %517 = vmatpush1.msra.mxu0 0.0
        %518 = vmatprep.subr.mxu0 0.0
        %519 = vmatpush1.msra.mxu0 0.0
        %520 = vmatprep.subr.mxu0 0.0
        %521 = vmatpush1.msra.mxu0 0.0
        %522 = vmatprep.subr.mxu0 0.0
        %523 = vmatpush1.msra.mxu0 0.0
        %524 = vmatprep.subr.mxu0 0.0
        %525 = vmatpush1.msra.mxu0 0.0
        %526 = vmatprep.subr.mxu0 0.0
        %527 = vmatpush1.msra.mxu0 0.0
        %528 = vmatprep.mubr.f32.mxu0 0.0
        %529 = vmatmul.mubr.f32.gmra.mrb[0].mxu0 %v462
        %v530 = vpop.f32.mrb[0].mxu0
        %v531 = vadd.f32 0.0, %v530
        %v532 = vpop.f32.mrb[0].mxu0
        %533 = vdwg.mxu0
        %v534 = vld [vmem:[%s2] sm:$0xff]
        %535 = vmatprep.subr.mxu0 0.0
        %536 = vmatpush1.msra.mxu0 %v534
        %537 = vmatprep.subr.mxu0 0.0
        %538 = vmatpush1.msra.mxu0 0.0
        %539 = vmatprep.subr.mxu0 0.0
        %540 = vmatpush1.msra.mxu0 0.0
        %541 = vmatprep.subr.mxu0 0.0
        %542 = vmatpush1.msra.mxu0 0.0
        %543 = vmatprep.subr.mxu0 0.0
        %544 = vmatpush1.msra.mxu0 0.0
        %545 = vmatprep.subr.mxu0 0.0
        %546 = vmatpush1.msra.mxu0 0.0
        %547 = vmatprep.subr.mxu0 0.0
        %548 = vmatpush1.msra.mxu0 0.0
        %549 = vmatprep.subr.mxu0 0.0
        %550 = vmatpush1.msra.mxu0 0.0
        %551 = vmatprep.subr.mxu0 0.0
        %552 = vmatpush1.msra.mxu0 0.0
        %553 = vmatprep.subr.mxu0 0.0
        %554 = vmatpush1.msra.mxu0 0.0
        %555 = vmatprep.subr.mxu0 0.0
        %556 = vmatpush1.msra.mxu0 0.0
        %557 = vmatprep.subr.mxu0 0.0
        %558 = vmatpush1.msra.mxu0 0.0
        %559 = vmatprep.subr.mxu0 0.0
        %560 = vmatpush1.msra.mxu0 0.0
        %561 = vmatprep.subr.mxu0 0.0
        %562 = vmatpush1.msra.mxu0 0.0
        %563 = vmatprep.subr.mxu0 0.0
        %564 = vmatpush1.msra.mxu0 0.0
        %565 = vmatprep.subr.mxu0 0.0
        %566 = vmatpush1.msra.mxu0 0.0
        %567 = vmatprep.subr.mxu0 0.0
        %568 = vmatpush1.msra.mxu0 0.0
        %569 = vmatprep.subr.mxu0 0.0
        %570 = vmatpush1.msra.mxu0 0.0
        %571 = vmatprep.subr.mxu0 0.0
        %572 = vmatpush1.msra.mxu0 0.0
        %573 = vmatprep.subr.mxu0 0.0
        %574 = vmatpush1.msra.mxu0 0.0
        %575 = vmatprep.subr.mxu0 0.0
        %576 = vmatpush1.msra.mxu0 0.0
        %577 = vmatprep.subr.mxu0 0.0
        %578 = vmatpush1.msra.mxu0 0.0
        %579 = vmatprep.subr.mxu0 0.0
        %580 = vmatpush1.msra.mxu0 0.0
        %581 = vmatprep.subr.mxu0 0.0
        %582 = vmatpush1.msra.mxu0 0.0
        %583 = vmatprep.subr.mxu0 0.0
        %584 = vmatpush1.msra.mxu0 0.0
        %585 = vmatprep.subr.mxu0 0.0
        %586 = vmatpush1.msra.mxu0 0.0
        %587 = vmatprep.subr.mxu0 0.0
        %588 = vmatpush1.msra.mxu0 0.0
        %589 = vmatprep.subr.mxu0 0.0
        %590 = vmatpush1.msra.mxu0 0.0
        %591 = vmatprep.subr.mxu0 0.0
        %592 = vmatpush1.msra.mxu0 0.0
        %593 = vmatprep.subr.mxu0 0.0
        %594 = vmatpush1.msra.mxu0 0.0
        %595 = vmatprep.subr.mxu0 0.0
        %596 = vmatpush1.msra.mxu0 0.0
        %597 = vmatprep.subr.mxu0 0.0
        %598 = vmatpush1.msra.mxu0 0.0
        %599 = vmatprep.mubr.f32.mxu0 0.0
        %600 = vmatmul.mubr.f32.gmra.mrb[0].mxu0 %v462
        %v601 = vpop.f32.mrb[0].mxu0
        %v602 = vadd.f32 0.0, %v601
        %v603 = vpop.f32.mrb[0].mxu0
        %604 = vdwg.mxu0
        %v605 = vld [vmem:[#allocation6] sm:$0xf]
        %v606 = vld [vmem:[%s6] sm:$0x1]
        %v608 = vlaneseq
        %v609 = vshrl.u32 %v608, 7
        %v610 = vsub.s32 0, %v609
        %v611 = vrot.slane %v606, %v610
        %vm613 = vcmask 31744
        %v615 = vsel %vm613, %v602, 0
        %vm617 = vcmask 1043456
        %v619 = vsel %vm617, %v605, 0
        %621 = vmatprep.subr.mxu0 0.0
        %622 = vmatpush1.msra.mxu0 %v619
        %623 = vmatprep.subr.mxu0 0.0
        %624 = vmatpush1.msra.mxu0 0.0
        %625 = vmatprep.subr.mxu0 0.0
        %626 = vmatpush1.msra.mxu0 0.0
        %627 = vmatprep.subr.mxu0 0.0
        %628 = vmatpush1.msra.mxu0 0.0
        %629 = vmatprep.subr.mxu0 0.0
        %630 = vmatpush1.msra.mxu0 0.0
        %631 = vmatprep.subr.mxu0 0.0
        %632 = vmatpush1.msra.mxu0 0.0
        %633 = vmatprep.subr.mxu0 0.0
        %634 = vmatpush1.msra.mxu0 0.0
        %635 = vmatprep.subr.mxu0 0.0
        %636 = vmatpush1.msra.mxu0 0.0
        %637 = vmatprep.subr.mxu0 0.0
        %638 = vmatpush1.msra.mxu0 0.0
        %639 = vmatprep.subr.mxu0 0.0
        %640 = vmatpush1.msra.mxu0 0.0
        %641 = vmatprep.subr.mxu0 0.0
        %642 = vmatpush1.msra.mxu0 0.0
        %643 = vmatprep.subr.mxu0 0.0
        %644 = vmatpush1.msra.mxu0 0.0
        %645 = vmatprep.subr.mxu0 0.0
        %646 = vmatpush1.msra.mxu0 0.0
        %647 = vmatprep.subr.mxu0 0.0
        %648 = vmatpush1.msra.mxu0 0.0
        %649 = vmatprep.subr.mxu0 0.0
        %650 = vmatpush1.msra.mxu0 0.0
        %651 = vmatprep.subr.mxu0 0.0
        %652 = vmatpush1.msra.mxu0 0.0
        %653 = vmatprep.subr.mxu0 0.0
        %654 = vmatpush1.msra.mxu0 0.0
        %655 = vmatprep.subr.mxu0 0.0
        %656 = vmatpush1.msra.mxu0 0.0
        %657 = vmatprep.subr.mxu0 0.0
        %658 = vmatpush1.msra.mxu0 0.0
        %659 = vmatprep.subr.mxu0 0.0
        %660 = vmatpush1.msra.mxu0 0.0
        %661 = vmatprep.subr.mxu0 0.0
        %662 = vmatpush1.msra.mxu0 0.0
        %663 = vmatprep.subr.mxu0 0.0
        %664 = vmatpush1.msra.mxu0 0.0
        %665 = vmatprep.subr.mxu0 0.0
        %666 = vmatpush1.msra.mxu0 0.0
        %667 = vmatprep.subr.mxu0 0.0
        %668 = vmatpush1.msra.mxu0 0.0
        %669 = vmatprep.subr.mxu0 0.0
        %670 = vmatpush1.msra.mxu0 0.0
        %671 = vmatprep.subr.mxu0 0.0
        %672 = vmatpush1.msra.mxu0 0.0
        %673 = vmatprep.subr.mxu0 0.0
        %674 = vmatpush1.msra.mxu0 0.0
        %675 = vmatprep.subr.mxu0 0.0
        %676 = vmatpush1.msra.mxu0 0.0
        %677 = vmatprep.subr.mxu0 0.0
        %678 = vmatpush1.msra.mxu0 0.0
        %679 = vmatprep.subr.mxu0 0.0
        %680 = vmatpush1.msra.mxu0 0.0
        %681 = vmatprep.subr.mxu0 0.0
        %682 = vmatpush1.msra.mxu0 0.0
        %683 = vmatprep.subr.mxu0 0.0
        %684 = vmatpush1.msra.mxu0 0.0
        %685 = vmatprep.mubr.f32.mxu0 0.0
        %686 = vmatmul.mubr.f32.gmra.mrb[0].mxu0 %v615
        %v687 = vpop.f32.mrb[0].mxu0
        %v688 = vadd.f32 %v611, %v687
        %v689 = vpop.f32.mrb[0].mxu0
        %690 = vdwg.mxu0
        %v691 = vmax.f32 %v688, 0.0
        %v692 = vld [vmem:[%s7] sm:$0xff]
        %v693 = vld [vmem:[%s7 + $0x8] sm:$0xff]
        %v694 = vld [vmem:[%s7 + $0x10] sm:$0xff]
        %v695 = vld [vmem:[%s7 + $0x18] sm:$0xff]
        %v696 = vld [vmem:[%s8] sm:$0x1]
        %v698 = vlaneseq
        %v699 = vshrl.u32 %v698, 7
        %v700 = vsub.s32 0, %v699
        %v701 = vrot.slane %v696, %v700
        %vm703 = vcmask 261120
        %v705 = vsel %vm703, %v691, 0
        %707 = vmatprep.subr.mxu0 0.0
        %708 = vmatpush1.msra.mxu0 %v692
        %709 = vmatprep.subr.mxu0 0.0
        %710 = vmatpush1.msra.mxu0 %v693
        %711 = vmatprep.subr.mxu0 0.0
        %712 = vmatpush1.msra.mxu0 %v694
        %713 = vmatprep.subr.mxu0 0.0
        %714 = vmatpush1.msra.mxu0 %v695
        %715 = vmatprep.subr.mxu0 0.0
        %716 = vmatpush1.msra.mxu0 0.0
        %717 = vmatprep.subr.mxu0 0.0
        %718 = vmatpush1.msra.mxu0 0.0
        %719 = vmatprep.subr.mxu0 0.0
        %720 = vmatpush1.msra.mxu0 0.0
        %721 = vmatprep.subr.mxu0 0.0
        %722 = vmatpush1.msra.mxu0 0.0
        %723 = vmatprep.subr.mxu0 0.0
        %724 = vmatpush1.msra.mxu0 0.0
        %725 = vmatprep.subr.mxu0 0.0
        %726 = vmatpush1.msra.mxu0 0.0
        %727 = vmatprep.subr.mxu0 0.0
        %728 = vmatpush1.msra.mxu0 0.0
        %729 = vmatprep.subr.mxu0 0.0
        %730 = vmatpush1.msra.mxu0 0.0
        %731 = vmatprep.subr.mxu0 0.0
        %732 = vmatpush1.msra.mxu0 0.0
        %733 = vmatprep.subr.mxu0 0.0
        %734 = vmatpush1.msra.mxu0 0.0
        %735 = vmatprep.subr.mxu0 0.0
        %736 = vmatpush1.msra.mxu0 0.0
        %737 = vmatprep.subr.mxu0 0.0
        %738 = vmatpush1.msra.mxu0 0.0
        %739 = vmatprep.subr.mxu0 0.0
        %740 = vmatpush1.msra.mxu0 0.0
        %741 = vmatprep.subr.mxu0 0.0
        %742 = vmatpush1.msra.mxu0 0.0
        %743 = vmatprep.subr.mxu0 0.0
        %744 = vmatpush1.msra.mxu0 0.0
        %745 = vmatprep.subr.mxu0 0.0
        %746 = vmatpush1.msra.mxu0 0.0
        %747 = vmatprep.subr.mxu0 0.0
        %748 = vmatpush1.msra.mxu0 0.0
        %749 = vmatprep.subr.mxu0 0.0
        %750 = vmatpush1.msra.mxu0 0.0
        %751 = vmatprep.subr.mxu0 0.0
        %752 = vmatpush1.msra.mxu0 0.0
        %753 = vmatprep.subr.mxu0 0.0
        %754 = vmatpush1.msra.mxu0 0.0
        %755 = vmatprep.subr.mxu0 0.0
        %756 = vmatpush1.msra.mxu0 0.0
        %757 = vmatprep.subr.mxu0 0.0
        %758 = vmatpush1.msra.mxu0 0.0
        %759 = vmatprep.subr.mxu0 0.0
        %760 = vmatpush1.msra.mxu0 0.0
        %761 = vmatprep.subr.mxu0 0.0
        %762 = vmatpush1.msra.mxu0 0.0
        %763 = vmatprep.subr.mxu0 0.0
        %764 = vmatpush1.msra.mxu0 0.0
        %765 = vmatprep.subr.mxu0 0.0
        %766 = vmatpush1.msra.mxu0 0.0
        %767 = vmatprep.subr.mxu0 0.0
        %768 = vmatpush1.msra.mxu0 0.0
        %769 = vmatprep.subr.mxu0 0.0
        %770 = vmatpush1.msra.mxu0 0.0
        %771 = vmatprep.mubr.f32.mxu0 0.0
        %772 = vmatmul.mubr.f32.gmra.mrb[0].mxu0 %v705
        %v773 = vpop.f32.mrb[0].mxu0
        %v774 = vadd.f32 %v701, %v773
        %v775 = vpop.f32.mrb[0].mxu0
        %776 = vdwg.mxu0
        %v777 = vmax.f32 %v774, 0.0
        %v778 = vld [vmem:[%s9] sm:$0xff]
        %v779 = vld [vmem:[%s9 + $0x8] sm:$0xff]
        %v780 = vld [vmem:[%s9 + $0x10] sm:$0xff]
        %v781 = vld [vmem:[%s9 + $0x18] sm:$0xff]
        %v782 = vld [vmem:[%s10] sm:$0x1]
        %v784 = vlaneseq
        %v785 = vshrl.u32 %v784, 7
        %v786 = vsub.s32 0, %v785
        %v787 = vrot.slane %v782, %v786
        %v790 = vsel %vm703, %v777, 0
        %792 = vmatprep.subr.mxu0 0.0
        %793 = vmatpush1.msra.mxu0 %v778
        %794 = vmatprep.subr.mxu0 0.0
        %795 = vmatpush1.msra.mxu0 %v779
        %796 = vmatprep.subr.mxu0 0.0
        %797 = vmatpush1.msra.mxu0 %v780
        %798 = vmatprep.subr.mxu0 0.0
        %799 = vmatpush1.msra.mxu0 %v781
        %800 = vmatprep.subr.mxu0 0.0
        %801 = vmatpush1.msra.mxu0 0.0
        %802 = vmatprep.subr.mxu0 0.0
        %803 = vmatpush1.msra.mxu0 0.0
        %804 = vmatprep.subr.mxu0 0.0
        %805 = vmatpush1.msra.mxu0 0.0
        %806 = vmatprep.subr.mxu0 0.0
        %807 = vmatpush1.msra.mxu0 0.0
        %808 = vmatprep.subr.mxu0 0.0
        %809 = vmatpush1.msra.mxu0 0.0
        %810 = vmatprep.subr.mxu0 0.0
        %811 = vmatpush1.msra.mxu0 0.0
        %812 = vmatprep.subr.mxu0 0.0
        %813 = vmatpush1.msra.mxu0 0.0
        %814 = vmatprep.subr.mxu0 0.0
        %815 = vmatpush1.msra.mxu0 0.0
        %816 = vmatprep.subr.mxu0 0.0
        %817 = vmatpush1.msra.mxu0 0.0
        %818 = vmatprep.subr.mxu0 0.0
        %819 = vmatpush1.msra.mxu0 0.0
        %820 = vmatprep.subr.mxu0 0.0
        %821 = vmatpush1.msra.mxu0 0.0
        %822 = vmatprep.subr.mxu0 0.0
        %823 = vmatpush1.msra.mxu0 0.0
        %824 = vmatprep.subr.mxu0 0.0
        %825 = vmatpush1.msra.mxu0 0.0
        %826 = vmatprep.subr.mxu0 0.0
        %827 = vmatpush1.msra.mxu0 0.0
        %828 = vmatprep.subr.mxu0 0.0
        %829 = vmatpush1.msra.mxu0 0.0
        %830 = vmatprep.subr.mxu0 0.0
        %831 = vmatpush1.msra.mxu0 0.0
        %832 = vmatprep.subr.mxu0 0.0
        %833 = vmatpush1.msra.mxu0 0.0
        %834 = vmatprep.subr.mxu0 0.0
        %835 = vmatpush1.msra.mxu0 0.0
        %836 = vmatprep.subr.mxu0 0.0
        %837 = vmatpush1.msra.mxu0 0.0
        %838 = vmatprep.subr.mxu0 0.0
        %839 = vmatpush1.msra.mxu0 0.0
        %840 = vmatprep.subr.mxu0 0.0
        %841 = vmatpush1.msra.mxu0 0.0
        %842 = vmatprep.subr.mxu0 0.0
        %843 = vmatpush1.msra.mxu0 0.0
        %844 = vmatprep.subr.mxu0 0.0
        %845 = vmatpush1.msra.mxu0 0.0
        %846 = vmatprep.subr.mxu0 0.0
        %847 = vmatpush1.msra.mxu0 0.0
        %848 = vmatprep.subr.mxu0 0.0
        %849 = vmatpush1.msra.mxu0 0.0
        %850 = vmatprep.subr.mxu0 0.0
        %851 = vmatpush1.msra.mxu0 0.0
        %852 = vmatprep.subr.mxu0 0.0
        %853 = vmatpush1.msra.mxu0 0.0
        %854 = vmatprep.subr.mxu0 0.0
        %855 = vmatpush1.msra.mxu0 0.0
        %856 = vmatprep.mubr.f32.mxu0 0.0
        %857 = vmatmul.mubr.f32.gmra.mrb[0].mxu0 %v790
        %v858 = vpop.f32.mrb[0].mxu0
        %v859 = vadd.f32 %v787, %v858
        %v860 = vpop.f32.mrb[0].mxu0
        %861 = vdwg.mxu0
        %863 = vrot.lane.b32.xlu0 %v859, 124
        %v864 = vpop.permute.xlu0 %863
        %v866 = vmax.f32 %v859, %v864
        %867 = vrot.lane.b32.xlu0 %v859, 120
        %v868 = vpop.permute.xlu0 %867
        %v870 = vmax.f32 %v866, %v868
        %871 = vrot.lane.b32.xlu0 %v859, 116
        %v872 = vpop.permute.xlu0 %871
        %v874 = vmax.f32 %v870, %v872
        %875 = vrot.lane.b32.xlu0 %v859, 112
        %v876 = vpop.permute.xlu0 %875
        %v878 = vmax.f32 %v874, %v876
        %879 = vrot.lane.b32.xlu0 %v859, 108
        %v880 = vpop.permute.xlu0 %879
        %v882 = vmax.f32 %v878, %v880
        %883 = vrot.lane.b32.xlu0 %v859, 104
        %v884 = vpop.permute.xlu0 %883
        %v886 = vmax.f32 %v882, %v884
        %887 = vrot.lane.b32.xlu0 %v859, 100
        %v888 = vpop.permute.xlu0 %887
        %v890 = vmax.f32 %v886, %v888
        %v891 = vsub.f32 %v859, %v890
        %v892 = vmul.f32 %v891, 1.442695
        %v893 = vpow.pop %v892
        %895 = vrot.lane.b32.xlu0 %v890, 4
        %v896 = vpop.permute.xlu0 %895
        %v898 = vsub.f32 %v859, %v896
        %v899 = vmul.f32 %v898, 1.442695
        %v900 = vpow.pop %v899
        %901 = vrot.lane.b32.xlu0 %v890, 8
        %v902 = vpop.permute.xlu0 %901
        %v904 = vsub.f32 %v859, %v902
        %v905 = vmul.f32 %v904, 1.442695
        %v906 = vpow.pop %v905
        %907 = vrot.lane.b32.xlu0 %v890, 12
        %v908 = vpop.permute.xlu0 %907
        %v910 = vsub.f32 %v859, %v908
        %v911 = vmul.f32 %v910, 1.442695
        %v912 = vpow.pop %v911
        %913 = vrot.lane.b32.xlu0 %v890, 16
        %v914 = vpop.permute.xlu0 %913
        %v916 = vsub.f32 %v859, %v914
        %v917 = vmul.f32 %v916, 1.442695
        %v918 = vpow.pop %v917
        %919 = vrot.lane.b32.xlu0 %v890, 20
        %v920 = vpop.permute.xlu0 %919
        %v922 = vsub.f32 %v859, %v920
        %v923 = vmul.f32 %v922, 1.442695
        %v924 = vpow.pop %v923
        %925 = vrot.lane.b32.xlu0 %v890, 24
        %v926 = vpop.permute.xlu0 %925
        %v928 = vsub.f32 %v859, %v926
        %v929 = vmul.f32 %v928, 1.442695
        %v930 = vpow.pop %v929
        %931 = vrot.lane.b32.xlu0 %v890, 28
        %v932 = vpop.permute.xlu0 %931
        %v934 = vsub.f32 %v859, %v932
        %v935 = vmul.f32 %v934, 1.442695
        %v936 = vpow.pop %v935
        %938 = vrot.lane.b32.xlu0 %v900, 124
        %v939 = vpop.permute.xlu0 %938
        %v941 = vadd.f32 %v893, %v939
        %943 = vrot.lane.b32.xlu0 %v906, 120
        %v944 = vpop.permute.xlu0 %943
        %v946 = vadd.f32 %v941, %v944
        %948 = vrot.lane.b32.xlu0 %v912, 116
        %v949 = vpop.permute.xlu0 %948
        %v951 = vadd.f32 %v946, %v949
        %953 = vrot.lane.b32.xlu0 %v918, 112
        %v954 = vpop.permute.xlu0 %953
        %v956 = vadd.f32 %v951, %v954
        %958 = vrot.lane.b32.xlu0 %v924, 108
        %v959 = vpop.permute.xlu0 %958
        %v961 = vadd.f32 %v956, %v959
        %963 = vrot.lane.b32.xlu0 %v930, 104
        %v964 = vpop.permute.xlu0 %963
        %v966 = vadd.f32 %v961, %v964
        %968 = vrot.lane.b32.xlu0 %v936, 100
        %v969 = vpop.permute.xlu0 %968
        %v971 = vadd.f32 %v966, %v969
        %v972 = vrcp.pop %v971
        %v973 = vmul.f32 1.0, %v972
        %v974 = vmul.f32 %v893, %v973
        %976 = vrot.lane.b32.xlu0 %v973, 4
        %v977 = vpop.permute.xlu0 %976
        %v979 = vmul.f32 %v900, %v977
        %980 = vrot.lane.b32.xlu0 %v973, 8
        %v981 = vpop.permute.xlu0 %980
        %v983 = vmul.f32 %v906, %v981
        %984 = vrot.lane.b32.xlu0 %v973, 12
        %v985 = vpop.permute.xlu0 %984
        %v987 = vmul.f32 %v912, %v985
        %988 = vrot.lane.b32.xlu0 %v973, 16
        %v989 = vpop.permute.xlu0 %988
        %v991 = vmul.f32 %v918, %v989
        %992 = vrot.lane.b32.xlu0 %v973, 20
        %v993 = vpop.permute.xlu0 %992
        %v995 = vmul.f32 %v924, %v993
        %996 = vrot.lane.b32.xlu0 %v973, 24
        %v997 = vpop.permute.xlu0 %996
        %v999 = vmul.f32 %v930, %v997
        %1000 = vrot.lane.b32.xlu0 %v973, 28
        %v1001 = vpop.permute.xlu0 %1000
        %v1003 = vmul.f32 %v936, %v1001
        %v1004 = vmul.f32 %v974, 0.9992
        %v1005 = vadd.f32 %v1004, 0.0001
        %v1006 = vmul.f32 %v1005, 2.0
        %v1007 = vmul.f32 %v979, 0.9992
        %v1008 = vadd.f32 %v1007, 0.0001
        %v1009 = vmul.f32 %v1008, 2.0
        %v1010 = vmul.f32 %v983, 0.9992
        %v1011 = vadd.f32 %v1010, 0.0001
        %v1012 = vmul.f32 %v1011, 2.0
        %v1013 = vmul.f32 %v987, 0.9992
        %v1014 = vadd.f32 %v1013, 0.0001
        %v1015 = vmul.f32 %v1014, 2.0
        %v1016 = vmul.f32 %v991, 0.9992
        %v1017 = vadd.f32 %v1016, 0.0001
        %v1018 = vmul.f32 %v1017, 2.0
        %v1019 = vmul.f32 %v995, 0.9992
        %v1020 = vadd.f32 %v1019, 0.0001
        %v1021 = vmul.f32 %v1020, 2.0
        %v1022 = vmul.f32 %v999, 0.9992
        %v1023 = vadd.f32 %v1022, 0.0001
        %v1024 = vmul.f32 %v1023, 2.0
        %v1025 = vmul.f32 %v1003, 0.9992
        %v1026 = vadd.f32 %v1025, 0.0001
        %v1027 = vmul.f32 %v1026, 2.0
        %v1028 = vadd.f32 %v859, 0.54116666
        %vm1029 = vcmp.gt.f32.partialorder %v1028, 20.0
        %v1030 = vmin.f32 %v1028, 20.0
        %v1031 = vmul.f32 %v1030, 1.442695
        %v1032 = vpow.pop %v1031
        %v1033 = vadd.f32 %v1032, 1.0
        %v1034 = vlog2.pop %v1033
        %v1035 = vmul.f32 %v1034, 0.6931472
        %v1036 = vsel %vm1029, %v1028, %v1035
        %v1037 = vadd.f32 %v1036, 0.0001
        %v1038 = vadd.f32 %v1006, 0.0
        %v1039 = vadd.f32 %v1038, -1.0
        %1041 = vrot.lane.b32.xlu0 %v1009, 124
        %v1042 = vpop.permute.xlu0 %1041
        %v1044 = vadd.f32 %v1038, %v1042
        %v1045 = vadd.f32 %v1044, -1.0
        %1047 = vrot.lane.b32.xlu0 %v1012, 120
        %v1048 = vpop.permute.xlu0 %1047
        %v1050 = vadd.f32 %v1044, %v1048
        %v1051 = vadd.f32 %v1050, -1.0
        %1053 = vrot.lane.b32.xlu0 %v1015, 116
        %v1054 = vpop.permute.xlu0 %1053
        %v1056 = vadd.f32 %v1050, %v1054
        %v1057 = vadd.f32 %v1056, -1.0
        %1059 = vrot.lane.b32.xlu0 %v1018, 112
        %v1060 = vpop.permute.xlu0 %1059
        %v1062 = vadd.f32 %v1056, %v1060
        %v1063 = vadd.f32 %v1062, -1.0
        %1065 = vrot.lane.b32.xlu0 %v1021, 108
        %v1066 = vpop.permute.xlu0 %1065
        %v1068 = vadd.f32 %v1062, %v1066
        %v1069 = vadd.f32 %v1068, -1.0
        %1071 = vrot.lane.b32.xlu0 %v1024, 104
        %v1072 = vpop.permute.xlu0 %1071
        %v1074 = vadd.f32 %v1068, %v1072
        %v1075 = vadd.f32 %v1074, -1.0
        %1077 = vrot.lane.b32.xlu0 %v1027, 100
        %v1078 = vpop.permute.xlu0 %1077
        %v1080 = vadd.f32 %v1074, %v1078
        %v1081 = vadd.f32 %v1080, -1.0
        %vm1082 = vcmp.le.f32.partialorder %v531, -0.999
        %vm1083 = vcmp.ge.f32.partialorder %v531, 0.999
        %vm1084 = vmor %vm1082, %vm1083
        %v1085 = vsel %vm1084, 0.0, %v531
        %vm1086 = vcmp.le.f32.partialorder %v1039, %v1085
        %v1087 = vsel %vm1086, 1, 0
        %vm1088 = vcmp.le.f32.partialorder %v1045, %v1085
        %v1089 = vsel %vm1088, 1, 0
        %v1090 = vadd.s32 %v1087, %v1089
        %vm1091 = vcmp.le.f32.partialorder %v1051, %v1085
        %v1092 = vsel %vm1091, 1, 0
        %v1093 = vadd.s32 %v1090, %v1092
        %vm1094 = vcmp.le.f32.partialorder %v1057, %v1085
        %v1095 = vsel %vm1094, 1, 0
        %v1096 = vadd.s32 %v1093, %v1095
        %vm1097 = vcmp.le.f32.partialorder %v1063, %v1085
        %v1098 = vsel %vm1097, 1, 0
        %v1099 = vadd.s32 %v1096, %v1098
        %vm1100 = vcmp.le.f32.partialorder %v1069, %v1085
        %v1101 = vsel %vm1100, 1, 0
        %v1102 = vadd.s32 %v1099, %v1101
        %vm1103 = vcmp.le.f32.partialorder %v1075, %v1085
        %v1104 = vsel %vm1103, 1, 0
        %v1105 = vadd.s32 %v1102, %v1104
        %vm1106 = vcmp.le.f32.partialorder %v1081, %v1085
        %v1107 = vsel %vm1106, 1, 0
        %v1108 = vadd.s32 %v1105, %v1107
        %vm1109 = vcmp.lt.s32.totalorder %v1108, 7
        %v1110 = vsel %vm1109, %v1108, 7
        %vm1111 = vcmp.eq.s32.totalorder %v1110, 0
        %vm1112 = vcmp.eq.s32.totalorder %v1110, 1
        %vm1113 = vcmp.eq.s32.totalorder %v1110, 2
        %vm1114 = vcmp.eq.s32.totalorder %v1110, 3
        %vm1115 = vcmp.eq.s32.totalorder %v1110, 4
        %vm1116 = vcmp.eq.s32.totalorder %v1110, 5
        %vm1117 = vcmp.eq.s32.totalorder %v1110, 6
        %vm1118 = vcmp.eq.s32.totalorder %v1110, 7
        %v1119 = vsel %vm1112, %v1039, -1.0
        %v1120 = vsel %vm1113, %v1045, %v1119
        %v1121 = vsel %vm1114, %v1051, %v1120
        %v1122 = vsel %vm1115, %v1057, %v1121
        %v1123 = vsel %vm1116, %v1063, %v1122
        %v1124 = vsel %vm1117, %v1069, %v1123
        %v1125 = vsel %vm1118, %v1075, %v1124
        %1127 = vrot.lane.b32.xlu0 %v1039, 96
        %v1128 = vpop.permute.xlu0 %1127
        %v1130 = vsel %vm1112, %v1128, -1.0
        %1132 = vrot.lane.b32.xlu0 %v1045, 96
        %v1133 = vpop.permute.xlu0 %1132
        %v1135 = vsel %vm1113, %v1133, %v1130
        %1137 = vrot.lane.b32.xlu0 %v1051, 96
        %v1138 = vpop.permute.xlu0 %1137
        %v1140 = vsel %vm1114, %v1138, %v1135
        %1142 = vrot.lane.b32.xlu0 %v1057, 96
        %v1143 = vpop.permute.xlu0 %1142
        %v1145 = vsel %vm1115, %v1143, %v1140
        %1147 = vrot.lane.b32.xlu0 %v1063, 96
        %v1148 = vpop.permute.xlu0 %1147
        %v1150 = vsel %vm1116, %v1148, %v1145
        %1152 = vrot.lane.b32.xlu0 %v1069, 96
        %v1153 = vpop.permute.xlu0 %1152
        %v1155 = vsel %vm1117, %v1153, %v1150
        %1157 = vrot.lane.b32.xlu0 %v1075, 96
        %v1158 = vpop.permute.xlu0 %1157
        %v1160 = vsel %vm1118, %v1158, %v1155
        %v1161 = vsel %vm1112, %v1042, %v1006
        %v1162 = vsel %vm1113, %v1048, %v1161
        %v1163 = vsel %vm1114, %v1054, %v1162
        %v1164 = vsel %vm1115, %v1060, %v1163
        %v1165 = vsel %vm1116, %v1066, %v1164
        %v1166 = vsel %vm1117, %v1072, %v1165
        %v1167 = vsel %vm1118, %v1078, %v1166
        %1168 = vrot.lane.b32.xlu0 %v1009, 92
        %v1169 = vpop.permute.xlu0 %1168
        %1172 = vrot.lane.b32.xlu0 %v1006, 96
        %v1173 = vpop.permute.xlu0 %1172
        %v1175 = vsel %vm1112, %v1169, %v1173
        %1176 = vrot.lane.b32.xlu0 %v1012, 88
        %v1177 = vpop.permute.xlu0 %1176
        %v1179 = vsel %vm1113, %v1177, %v1175
        %1180 = vrot.lane.b32.xlu0 %v1015, 84
        %v1181 = vpop.permute.xlu0 %1180
        %v1183 = vsel %vm1114, %v1181, %v1179
        %1184 = vrot.lane.b32.xlu0 %v1018, 80
        %v1185 = vpop.permute.xlu0 %1184
        %v1187 = vsel %vm1115, %v1185, %v1183
        %1188 = vrot.lane.b32.xlu0 %v1021, 76
        %v1189 = vpop.permute.xlu0 %1188
        %v1191 = vsel %vm1116, %v1189, %v1187
        %1192 = vrot.lane.b32.xlu0 %v1024, 72
        %v1193 = vpop.permute.xlu0 %1192
        %v1195 = vsel %vm1117, %v1193, %v1191
        %1196 = vrot.lane.b32.xlu0 %v1027, 68
        %v1197 = vpop.permute.xlu0 %1196
        %v1199 = vsel %vm1118, %v1197, %v1195
        %1201 = vrot.lane.b32.xlu0 %v1037, 64
        %v1202 = vpop.permute.xlu0 %1201
        %v1204 = vsel %vm1112, %v1202, 1.0
        %1205 = vrot.lane.b32.xlu0 %v1037, 60
        %v1206 = vpop.permute.xlu0 %1205
        %v1208 = vsel %vm1113, %v1206, %v1204
        %1209 = vrot.lane.b32.xlu0 %v1037, 56
        %v1210 = vpop.permute.xlu0 %1209
        %v1212 = vsel %vm1114, %v1210, %v1208
        %1213 = vrot.lane.b32.xlu0 %v1037, 52
        %v1214 = vpop.permute.xlu0 %1213
        %v1216 = vsel %vm1115, %v1214, %v1212
        %1217 = vrot.lane.b32.xlu0 %v1037, 48
        %v1218 = vpop.permute.xlu0 %1217
        %v1220 = vsel %vm1116, %v1218, %v1216
        %1221 = vrot.lane.b32.xlu0 %v1037, 44
        %v1222 = vpop.permute.xlu0 %1221
        %v1224 = vsel %vm1117, %v1222, %v1220
        %1225 = vrot.lane.b32.xlu0 %v1037, 40
        %v1226 = vpop.permute.xlu0 %1225
        %v1228 = vsel %vm1118, %v1226, %v1224
        %v1229 = vsel %vm1111, %v1202, 1.0
        %v1230 = vsel %vm1112, %v1206, %v1229
        %v1231 = vsel %vm1113, %v1210, %v1230
        %v1232 = vsel %vm1114, %v1214, %v1231
        %v1233 = vsel %vm1115, %v1218, %v1232
        %v1234 = vsel %vm1116, %v1222, %v1233
        %v1235 = vsel %vm1117, %v1226, %v1234
        %v1236 = vrcp.pop %v1167
        %v1237 = vmul.f32 %v1199, %v1236
        %v1238 = vsub.f32 %v1085, %v1125
        %v1239 = vmul.f32 %v1238, %v1236
        %v1240 = vsub.f32 1.0, %v1239
        %v1241 = vmul.f32 %v1239, %v1240
        %v1242 = vmul.f32 %v1239, %v1239
        %v1243 = vadd.f32 %v1235, %v1228
        %v1244 = vmul.f32 %v1237, 2.0
        %v1245 = vsub.f32 %v1243, %v1244
        %v1246 = vmul.f32 %v1245, %v1241
        %v1247 = vadd.f32 %v1237, %v1246
        %v1248 = vmul.f32 %v1237, %v1242
        %v1249 = vmul.f32 %v1228, %v1241
        %v1250 = vadd.f32 %v1248, %v1249
        %v1251 = vmul.f32 %v1199, %v1250
        %v1252 = vrcp.pop %v1247
        %v1253 = vmul.f32 %v1251, %v1252
        %v1254 = vadd.f32 %v1160, %v1253
        %v1255 = vsel %vm1084, %v531, %v1254
        %v1256 = vlog2.pop %v1237
        %v1257 = vmul.f32 %v1256, 0.6931472
        %v1258 = vmul.f32 %v1257, 2.0
        %v1259 = vmul.f32 %v1235, %v1242
        %v1260 = vmul.f32 %v1244, %v1241
        %v1261 = vadd.f32 %v1259, %v1260
        %v1262 = vmul.f32 %v1228, %v1240
        %v1263 = vmul.f32 %v1262, %v1240
        %v1264 = vadd.f32 %v1261, %v1263
        %v1265 = vlog2.pop %v1264
        %v1266 = vmul.f32 %v1265, 0.6931472
        %v1267 = vadd.f32 %v1258, %v1266
        %v1268 = vlog2.pop %v1247
        %v1269 = vmul.f32 %v1268, 0.6931472
        %v1270 = vmul.f32 %v1269, 2.0
        %v1271 = vsub.f32 %v1267, %v1270
        %v1272 = vsel %vm1084, 0.0, %v1271
        %v1273 = vld [vmem:[#allocation2] sm:$0xf]
        %v1274 = vld [vmem:[#allocation4] sm:$0xf]
        %v1276 = vsel %vm617, %v1274, 0
        %1278 = vmatprep.subr.mxu0 0.0
        %1279 = vmatpush1.msra.mxu0 %v1276
        %1280 = vmatprep.subr.mxu0 0.0
        %1281 = vmatpush1.msra.mxu0 0.0
        %1282 = vmatprep.subr.mxu0 0.0
        %1283 = vmatpush1.msra.mxu0 0.0
        %1284 = vmatprep.subr.mxu0 0.0
        %1285 = vmatpush1.msra.mxu0 0.0
        %1286 = vmatprep.subr.mxu0 0.0
        %1287 = vmatpush1.msra.mxu0 0.0
        %1288 = vmatprep.subr.mxu0 0.0
        %1289 = vmatpush1.msra.mxu0 0.0
        %1290 = vmatprep.subr.mxu0 0.0
        %1291 = vmatpush1.msra.mxu0 0.0
        %1292 = vmatprep.subr.mxu0 0.0
        %1293 = vmatpush1.msra.mxu0 0.0
        %1294 = vmatprep.subr.mxu0 0.0
        %1295 = vmatpush1.msra.mxu0 0.0
        %1296 = vmatprep.subr.mxu0 0.0
        %1297 = vmatpush1.msra.mxu0 0.0
        %1298 = vmatprep.subr.mxu0 0.0
        %1299 = vmatpush1.msra.mxu0 0.0
        %1300 = vmatprep.subr.mxu0 0.0
        %1301 = vmatpush1.msra.mxu0 0.0
        %1302 = vmatprep.subr.mxu0 0.0
        %1303 = vmatpush1.msra.mxu0 0.0
        %1304 = vmatprep.subr.mxu0 0.0
        %1305 = vmatpush1.msra.mxu0 0.0
        %1306 = vmatprep.subr.mxu0 0.0
        %1307 = vmatpush1.msra.mxu0 0.0
        %1308 = vmatprep.subr.mxu0 0.0
        %1309 = vmatpush1.msra.mxu0 0.0
        %1310 = vmatprep.subr.mxu0 0.0
        %1311 = vmatpush1.msra.mxu0 0.0
        %1312 = vmatprep.subr.mxu0 0.0
        %1313 = vmatpush1.msra.mxu0 0.0
        %1314 = vmatprep.subr.mxu0 0.0
        %1315 = vmatpush1.msra.mxu0 0.0
        %1316 = vmatprep.subr.mxu0 0.0
        %1317 = vmatpush1.msra.mxu0 0.0
        %1318 = vmatprep.subr.mxu0 0.0
        %1319 = vmatpush1.msra.mxu0 0.0
        %1320 = vmatprep.subr.mxu0 0.0
        %1321 = vmatpush1.msra.mxu0 0.0
        %1322 = vmatprep.subr.mxu0 0.0
        %1323 = vmatpush1.msra.mxu0 0.0
        %1324 = vmatprep.subr.mxu0 0.0
        %1325 = vmatpush1.msra.mxu0 0.0
        %1326 = vmatprep.subr.mxu0 0.0
        %1327 = vmatpush1.msra.mxu0 0.0
        %1328 = vmatprep.subr.mxu0 0.0
        %1329 = vmatpush1.msra.mxu0 0.0
        %1330 = vmatprep.subr.mxu0 0.0
        %1331 = vmatpush1.msra.mxu0 0.0
        %1332 = vmatprep.subr.mxu0 0.0
        %1333 = vmatpush1.msra.mxu0 0.0
        %1334 = vmatprep.subr.mxu0 0.0
        %1335 = vmatpush1.msra.mxu0 0.0
        %1336 = vmatprep.subr.mxu0 0.0
        %1337 = vmatpush1.msra.mxu0 0.0
        %1338 = vmatprep.subr.mxu0 0.0
        %1339 = vmatpush1.msra.mxu0 0.0
        %1340 = vmatprep.subr.mxu0 0.0
        %1341 = vmatpush1.msra.mxu0 0.0
        %1342 = vmatprep.mubr.f32.mxu0 0.0
        %1343 = vmatmul.mubr.f32.gmra.mrb[0].mxu0 %v615
        %v1344 = vpop.f32.mrb[0].mxu0
        %v1345 = vadd.f32 0.0, %v1344
        %v1346 = vpop.f32.mrb[0].mxu0
        %1347 = vdwg.mxu0
        %v1349 = vsel %vm613, %v1255, 0
        %v1352 = vsel %vm617, %v1273, 0
        %1354 = vmatprep.subr.mxu0 0.0
        %1355 = vmatpush1.msra.mxu0 %v1352
        %1356 = vmatprep.subr.mxu0 0.0
        %1357 = vmatpush1.msra.mxu0 0.0
        %1358 = vmatprep.subr.mxu0 0.0
        %1359 = vmatpush1.msra.mxu0 0.0
        %1360 = vmatprep.subr.mxu0 0.0
        %1361 = vmatpush1.msra.mxu0 0.0
        %1362 = vmatprep.subr.mxu0 0.0
        %1363 = vmatpush1.msra.mxu0 0.0
        %1364 = vmatprep.subr.mxu0 0.0
        %1365 = vmatpush1.msra.mxu0 0.0
        %1366 = vmatprep.subr.mxu0 0.0
        %1367 = vmatpush1.msra.mxu0 0.0
        %1368 = vmatprep.subr.mxu0 0.0
        %1369 = vmatpush1.msra.mxu0 0.0
        %1370 = vmatprep.subr.mxu0 0.0
        %1371 = vmatpush1.msra.mxu0 0.0
        %1372 = vmatprep.subr.mxu0 0.0
        %1373 = vmatpush1.msra.mxu0 0.0
        %1374 = vmatprep.subr.mxu0 0.0
        %1375 = vmatpush1.msra.mxu0 0.0
        %1376 = vmatprep.subr.mxu0 0.0
        %1377 = vmatpush1.msra.mxu0 0.0
        %1378 = vmatprep.subr.mxu0 0.0
        %1379 = vmatpush1.msra.mxu0 0.0
        %1380 = vmatprep.subr.mxu0 0.0
        %1381 = vmatpush1.msra.mxu0 0.0
        %1382 = vmatprep.subr.mxu0 0.0
        %1383 = vmatpush1.msra.mxu0 0.0
        %1384 = vmatprep.subr.mxu0 0.0
        %1385 = vmatpush1.msra.mxu0 0.0
        %1386 = vmatprep.subr.mxu0 0.0
        %1387 = vmatpush1.msra.mxu0 0.0
        %1388 = vmatprep.subr.mxu0 0.0
        %1389 = vmatpush1.msra.mxu0 0.0
        %1390 = vmatprep.subr.mxu0 0.0
        %1391 = vmatpush1.msra.mxu0 0.0
        %1392 = vmatprep.subr.mxu0 0.0
        %1393 = vmatpush1.msra.mxu0 0.0
        %1394 = vmatprep.subr.mxu0 0.0
        %1395 = vmatpush1.msra.mxu0 0.0
        %1396 = vmatprep.subr.mxu0 0.0
        %1397 = vmatpush1.msra.mxu0 0.0
        %1398 = vmatprep.subr.mxu0 0.0
        %1399 = vmatpush1.msra.mxu0 0.0
        %1400 = vmatprep.subr.mxu0 0.0
        %1401 = vmatpush1.msra.mxu0 0.0
        %1402 = vmatprep.subr.mxu0 0.0
        %1403 = vmatpush1.msra.mxu0 0.0
        %1404 = vmatprep.subr.mxu0 0.0
        %1405 = vmatpush1.msra.mxu0 0.0
        %1406 = vmatprep.subr.mxu0 0.0
        %1407 = vmatpush1.msra.mxu0 0.0
        %1408 = vmatprep.subr.mxu0 0.0
        %1409 = vmatpush1.msra.mxu0 0.0
        %1410 = vmatprep.subr.mxu0 0.0
        %1411 = vmatpush1.msra.mxu0 0.0
        %1412 = vmatprep.subr.mxu0 0.0
        %1413 = vmatpush1.msra.mxu0 0.0
        %1414 = vmatprep.subr.mxu0 0.0
        %1415 = vmatpush1.msra.mxu0 0.0
        %1416 = vmatprep.subr.mxu0 0.0
        %1417 = vmatpush1.msra.mxu0 0.0
        %1418 = vmatprep.mubr.f32.mxu0 0.0
        %1419 = vmatmul.mubr.f32.gmra.mrb[0].mxu0 %v1349
        %v1420 = vpop.f32.mrb[0].mxu0
        %v1421 = vadd.f32 %v1345, %v1420
        %v1422 = vpop.f32.mrb[0].mxu0
        %1423 = vdwg.mxu0
        %1424 = vst.msk [vmem:[%s453] sm:$0xff] %vm460, %v1421
        %v1425 = vsel %vm613, %v1272, 0.0
        %1426 = vadd.xlane.f32.xlu0 %v1425
        %v1427 = vpop.xlane.xlu0 %1426
        %vm1428 = vcmask 7168
        %1429 = vst.msk [vmem:[%s457] sm:$0xff] %vm1428, %v1427
        %p1430 = scmp.lt.s32.totalorder %s26, 1
        %s1431 = scalar_select %p1430, %s26, 1
        %s1432 = smul.addr %s1431, 8
        %s1433 = scalar_lea.vmem %s11, %s1432
        %p1434 = scmp.lt.s32.totalorder %s26, 1
        %s1435 = scalar_select %p1434, %s26, 1
        %s1436 = smul.addr %s1435, 8
        %s1437 = scalar_lea.vmem %s12, %s1436
        // Predicated region
        $region77: #{tpu_custom_call.1} parent=63 // pred_check
          %p1438 = pneg %p280
        $region78: #{tpu_custom_call.1} parent=63 // pred_check_branch
          %1440 = sbr.rel (%p1438) target = $region80
        $region79: #{tpu_custom_call.1} parent=63 // pred_region
          _
        $region80: #{tpu_custom_call.1} parent=63 // pred_fallthru
          _
        // Predicated region
        $region81: #{tpu_custom_call.1} parent=63 // pred_check
          %p1441 = pneg %p306
        $region82: #{tpu_custom_call.1} parent=63 // pred_check_branch
          %1443 = sbr.rel (%p1441) target = $region84
        $region83: #{tpu_custom_call.1} parent=63 // pred_region
          _
        $region84: #{tpu_custom_call.1} parent=63 // pred_fallthru
          _
      $region64: #{tpu_custom_call.1} parent=5 // pred_fallthru
        _
      %p1444 = scmp.le.s32.totalorder 2, %s21
      // Predicated region
      $region85: #{tpu_custom_call.1} parent=5 // pred_check
        %p1445 = pneg %p1444
      $region86: #{tpu_custom_call.1} parent=5 // pred_check_branch
        %1447 = sbr.rel (%p1445) target = $region88
      $region87: #{tpu_custom_call.1} parent=5 // pred_region
        %s1448 = ssub.s32 %s21, 2
        // Predicated region
        $region89: #{tpu_custom_call.1} parent=87 // pred_check
          %p1449 = pneg %p286
        $region90: #{tpu_custom_call.1} parent=87 // pred_check_branch
          %1451 = sbr.rel (%p1449) target = $region92
        $region91: #{tpu_custom_call.1} parent=87 // pred_region
          %p1452 = scmp.lt.s32.totalorder %s27, 1
          %s1453 = scalar_select %p1452, %s27, 1
          %s1454 = smul.addr %s1453, 8
          %s1455 = scalar_lea.vmem %s11, %s1454
        $region92: #{tpu_custom_call.1} parent=87 // pred_fallthru
          _
        // Predicated region
        $region93: #{tpu_custom_call.1} parent=87 // pred_check
          %p1456 = pneg %p312
        $region94: #{tpu_custom_call.1} parent=87 // pred_check_branch
          %1458 = sbr.rel (%p1456) target = $region96
        $region95: #{tpu_custom_call.1} parent=87 // pred_region
          %p1459 = scmp.lt.s32.totalorder %s27, 1
          %s1460 = scalar_select %p1459, %s27, 1
          %s1461 = smul.addr %s1460, 8
          %s1462 = scalar_lea.vmem %s12, %s1461
        $region96: #{tpu_custom_call.1} parent=87 // pred_fallthru
          _
      $region88: #{tpu_custom_call.1} parent=5 // pred_fallthru
        _
    $region6: #{tpu_custom_call.1} parent=1 // loop_footer
      %s25 = sadd.s32 1, %s21
    $region7: #{tpu_custom_call.1} parent=1 // loop_footer_branch
      %20 = sbr.rel target = $region3
    $region8: #{tpu_custom_call.1} parent=1 // loop_exit
      _
    %1463 = vsyncpa [#allocation3], 1
    %s1464 = scalar_lea.sflag [#allocation3], 1
    %1465 = vsyncpa %s1464, 1
    %1466 = vsyncpa [#allocation5], 1

</llo_original>
